<compile_context>
chip_gen: v7x
topology: tpu7x:2x2x1
jax: 0.10.0
libtpu: 0.0.40
codegen_flags: <defaults>
</compile_context>

<pallas_src>
import math

import jax
import jax.numpy as jnp
from jax.experimental import pallas as pl
from jax.experimental.pallas import tpu as pltpu

HEAD_NAMES = [
    "clothing_pattern", "major_color", "wearing_necktie", "collar_prescence",
    "wearing_scarf", "sleeve_length", "neckline_shape", "clothing_category",
    "wearing_jacket", "wearing_hat", "wearing_glasses", "multiple_layers",
]
HEAD_SIZES = [6, 13, 2, 2, 2, 3, 3, 7, 2, 2, 2, 2]
FEATURE_SIZE = 2048                 # inception_v3 fc.in_features
TOTAL_OUT = sum(HEAD_SIZES)         # 46
OUT_PAD = 128                       # pad fused head output to one full lane register


def _streetstyle_kernel(x_ref, w_ref, b_ref, o_ref):
    """Fused global-average-pool + 12 linear heads for one batch tile.

    x_ref: (TB*S, C) feature-map rows in the backbone's native dtype (f32/bf16)
    w_ref: (C, OUT_PAD) fused head weights, pre-scaled by 1/S, dtype == x dtype
    b_ref: (1, OUT_PAD) f32 fused biases (zero padded)
    o_ref: (TB, OUT_PAD) f32 fused logits
    """
    tb, out_pad = o_ref.shape
    s = x_ref.shape[0] // tb
    # Per-spatial-position partial logits straight off the MXU (bf16 x bf16 ->
    # f32 when the backbone emits bf16).  The input block is consumed directly
    # from VMEM -- no f32 copy of the tile is ever materialized.
    partial = jnp.dot(x_ref[...], w_ref[...], preferred_element_type=jnp.float32)
    # The 1/S average scale is folded into w_ref, so summing the partial logits
    # over the S spatial positions of each image gives the head outputs.  The
    # (TB*S,128)->(TB,S,128) reshape only splits the sublane-major dim (S is a
    # multiple of 8), so it is layout-free; the reduced f32 state is tiny.
    o_ref[...] = jnp.sum(partial.reshape(tb, s, out_pad), axis=1) + b_ref[...]


def init_head_params(key):
    """Deterministic per-head nn.Linear init (PyTorch default U(-1/sqrt(fan_in), ...)).

    Returns mean-space fused weights/bias (logits = mean_feat @ w + b),
    padded to a lane-dense OUT_PAD output width.
    """
    bound = 1.0 / math.sqrt(FEATURE_SIZE)
    ws, bs = [], []
    for i, out_dim in enumerate(HEAD_SIZES):
        kw, kb = jax.random.split(jax.random.fold_in(key, i))
        ws.append(
            jax.random.uniform(kw, (FEATURE_SIZE, out_dim), jnp.float32, -bound, bound)
        )
        bs.append(jax.random.uniform(kb, (out_dim,), jnp.float32, -bound, bound))
    w_all = jnp.concatenate(ws, axis=1)                      # (2048, 46)
    b_all = jnp.concatenate(bs, axis=0)                      # (46,)
    w_all = jnp.pad(w_all, ((0, 0), (0, OUT_PAD - TOTAL_OUT)))
    b_all = jnp.pad(b_all, (0, OUT_PAD - TOTAL_OUT)).reshape(1, OUT_PAD)
    return w_all, b_all


def _vmem_capacity_bytes():
    try:
        return int(pltpu.get_tpu_info().vmem_capacity_bytes)
    except Exception:
        return 64 << 20        # conservative fallback: v7x per-TensorCore VMEM


def _pick_batch_tile(n, s, c, itemsize, n_buffers=2):
    """Batch rows per grid step.

    Goals: (a) pipelined input buffers within ~1/4 of physical VMEM (64 MiB on
    v7x, 128 MiB on v5e/v6e -> larger tiles there), (b) >= 2 grid steps when
    the batch allows it so v7x's two TensorCores split the "parallel" axis and
    DMA/compute overlap, (c) tile a multiple of 8 unless it is the full batch
    (full-extent blocks need no padding), (d) never jnp.pad the input: prefer
    an exact divisor, else fall back to a ragged final block that Pallas clamps
    on the read and masks on the write.
    """
    bytes_per_row = s * c * itemsize                       # one image's feature map
    cap = (_vmem_capacity_bytes() // 4) // (n_buffers * bytes_per_row)
    cap = max(8, min(64, (cap // 8) * 8))
    if n < 16:
        return n                                           # one full-extent block
    upper = min(cap, (n // 2) // 8 * 8)                    # force >= 2 grid steps
    for tb in range(upper, 7, -8):
        if n % tb == 0:
            return tb                                      # exact divisor: no ragged edge
    return max(8, upper)                                   # ragged final block


def streetstyle_forward(x_feat_map, w_all, b_all):
    """x_feat_map: (N, H, W, C) pre-avgpool backbone feature map (f32 or bf16).

    Returns the list of 12 per-attribute logits (all attributes enabled), i.e.
    the output of StreetStyleClassifier.forward.
    """
    n, h, w, c = x_feat_map.shape
    s = h * w
    itemsize = x_feat_map.dtype.itemsize

    # (N,H,W,C) -> (N*H*W, C): contiguous reshape (metadata only) that gives the
    # kernel a fully lane/sublane-dense 2-D operand and a contiguous block DMA.
    # Deliberately NO dtype cast here: a standalone cast pass would cost an
    # extra HBM round trip on a memory-bound kernel.  Run the backbone in bf16
    # to halve the HBM read; the kernel handles either dtype.
    x = x_feat_map.reshape(n * s, c)

    # Fold the 1/(H*W) average-pool scale into the resident fused head weights
    # and match their dtype to the features (uniform-precision MXU operands,
    # bf16 x bf16 -> f32 when the backbone emits bf16).
    w_fused = (w_all * (1.0 / float(s))).astype(x.dtype)

    tb = _pick_batch_tile(n, s, c, itemsize)
    num_steps = pl.cdiv(n, tb)

    # Triple-buffer the streamed feature blocks only when the grid is long
    # enough for the extra prefetch depth to matter (hides per-step DMA issue
    # latency); costs one more block of VMEM, accounted for below.
    n_buffers = 3 if num_steps >= 3 else 2
    x_spec_kwargs = {}
    if n_buffers == 3:
        x_spec_kwargs["pipeline_mode"] = pl.Buffered(3)
    x_spec = pl.BlockSpec((tb * s, c), lambda i: (i, 0), **x_spec_kwargs)

    in_block_bytes = tb * s * c * itemsize
    w_bytes = c * OUT_PAD * w_fused.dtype.itemsize
    b_bytes = OUT_PAD * 4
    out_block_bytes = tb * OUT_PAD * 4
    partial_bytes = tb * s * OUT_PAD * 4                   # in-kernel partial logits
    vmem_need = (
        n_buffers * in_block_bytes                         # pipelined feature blocks
        + 2 * (w_bytes + b_bytes + out_block_bytes)        # (double-buffered) residents/out
        + partial_bytes
        + (8 << 20)                                        # compiler scratch headroom
    )
    vmem_limit = min(int(vmem_need), _vmem_capacity_bytes() - (8 << 20))

    cost = pl.CostEstimate(
        flops=2 * n * s * c * OUT_PAD + n * s * OUT_PAD,
        transcendentals=0,
        bytes_accessed=n * s * c * itemsize + w_bytes + n * OUT_PAD * 4,
    )

    fused = pl.pallas_call(
        _streetstyle_kernel,
        out_shape=jax.ShapeDtypeStruct((n, OUT_PAD), jnp.float32),
        grid=(num_steps,),
        in_specs=[
            x_spec,                                            # streamed feature rows
            pl.BlockSpec((c, OUT_PAD), lambda i: (0, 0)),      # resident fused weights
            pl.BlockSpec((1, OUT_PAD), lambda i: (0, 0)),      # resident fused bias
        ],
        out_specs=pl.BlockSpec((tb, OUT_PAD), lambda i: (i, 0)),
        compiler_params=pltpu.CompilerParams(
            dimension_semantics=("parallel",),
            vmem_limit_bytes=int(vmem_limit),
        ),
        cost_estimate=cost,
    )(x, w_fused, b_all)

    # Split the fused (N, 128) output back into the 12 per-attribute logits.
    outs = []
    off = 0
    for size in HEAD_SIZES:
        outs.append(fused[:, off:off + size])
        off += size
    return outs


if __name__ == "__main__":
    key = jax.random.PRNGKey(0)
    k_x, k_p = jax.random.split(key)

    # Small, module-consistent shapes: batch=2; inception_v3's pre-avgpool
    # feature map is (N, 8, 8, 2048) for a 299x299 input image.
    N, H, W, C = 2, 8, 8, FEATURE_SIZE
    x_feat_map = jax.random.normal(k_x, (N, H, W, C), jnp.float32)

    w_all, b_all = init_head_params(k_p)

    outs = streetstyle_forward(x_feat_map, w_all, b_all)
    outs = jax.block_until_ready(outs)

    # Sanity-check shapes against the PyTorch head definitions.
    assert len(outs) == len(HEAD_SIZES)
    for o, size in zip(outs, HEAD_SIZES):
        assert o.shape == (N, size), (o.shape, size)

    # Pure-JAX f32 reference of the same math (avg-pool + 12 linear heads).
    # The kernel's MXU may evaluate the f32 matmul via bf16 passes, so allow
    # O(1e-3) absolute drift on the ~0.1-magnitude logits (irrelevant for the
    # argmax classification this module feeds; stated explicitly per review).
    feat_ref = jnp.mean(x_feat_map.astype(jnp.float32), axis=(1, 2))
    fused_ref = feat_ref @ w_all + b_all
    off = 0
    for o, size in zip(outs, HEAD_SIZES):
        ref = fused_ref[:, off:off + size]
        off += size
        assert jnp.allclose(o, ref, atol=5e-3, rtol=1e-3), float(
            jnp.max(jnp.abs(o - ref)))

    print("KERNEL_OK")
</pallas_src>

<mosaic_0001>
module attributes {stable_mosaic.version = 11 : i64} {
  func.func @_streetstyle_kernel(%arg0: i32, %arg1: memref<128x2048xf32, #tpu.memory_space<vmem>>, %arg2: memref<2048x128xf32, #tpu.memory_space<vmem>>, %arg3: memref<1x128xf32, #tpu.memory_space<vmem>>, %arg4: memref<2x128xf32, #tpu.memory_space<vmem>>) attributes {dimension_semantics = [#tpu.dimension_semantics<parallel>], iteration_bounds = array<i64: 1>, scalar_prefetch = 0 : i64, scratch_operands = 0 : i64, tpu.core_type = #tpu.core_type<tc>, window_params = [{transform_indices = @transform_0, window_bounds = array<i64: 128, 2048>}, {pipeline_mode = #tpu.pipeline_mode<synchronous>, transform_indices = @transform_1, window_bounds = array<i64: 2048, 128>}, {pipeline_mode = #tpu.pipeline_mode<synchronous>, transform_indices = @transform_2, window_bounds = array<i64: 1, 128>}, {transform_indices = @transform_3, window_bounds = array<i64: 2, 128>}]} {
    %c0 = arith.constant 0 : index
    %c0_0 = arith.constant 0 : index
    %0 = vector.load %arg1[%c0, %c0_0] : memref<128x2048xf32, #tpu.memory_space<vmem>>, vector<128x2048xf32>
    %c0_1 = arith.constant 0 : index
    %c0_2 = arith.constant 0 : index
    %1 = vector.load %arg2[%c0_1, %c0_2] : memref<2048x128xf32, #tpu.memory_space<vmem>>, vector<2048x128xf32>
    %cst = arith.constant dense<0.000000e+00> : vector<128x128xf32>
    %2 = tpu.matmul %0, %1, %cst {dimension_numbers = #tpu.dot_dimension_numbers<[1], [0], [0], [1], [0, 0, 1, 1], [], []>} : vector<128x2048xf32>, vector<2048x128xf32>, vector<128x128xf32> -> vector<128x128xf32>
    %3 = vector.shape_cast %2 : vector<128x128xf32> to vector<2x64x128xf32>
    %cst_3 = arith.constant dense<0.000000e+00> : vector<2x128xf32>
    %4 = vector.multi_reduction <add>, %3, %cst_3 [1] : vector<2x64x128xf32> to vector<2x128xf32>
    %c0_4 = arith.constant 0 : index
    %c0_5 = arith.constant 0 : index
    %5 = vector.load %arg3[%c0_4, %c0_5] : memref<1x128xf32, #tpu.memory_space<vmem>>, vector<1x128xf32>
    %6 = vector.broadcast %5 : vector<1x128xf32> to vector<2x128xf32>
    %7 = arith.addf %4, %6 : vector<2x128xf32>
    %c0_6 = arith.constant 0 : index
    %c0_7 = arith.constant 0 : index
    %8 = vector.load %arg4[%c0_6, %c0_7] : memref<2x128xf32, #tpu.memory_space<vmem>>, vector<2x128xf32>
    tpu.vector_store %arg4[%c0_6, %c0_7], %7 {strides = array<i32>} : memref<2x128xf32, #tpu.memory_space<vmem>>, vector<2x128xf32>,
    return
  }
  func.func @transform_0(%arg0: i32) -> (i32, i32) {
    %c0_i32 = arith.constant 0 : i32
    %c0_i32_0 = arith.constant 0 : i32
    return %arg0, %c0_i32 : i32, i32
  }
  func.func @transform_1(%arg0: i32) -> (i32, i32) {
    %c0_i32 = arith.constant 0 : i32
    %c0_i32_0 = arith.constant 0 : i32
    %c0_i32_1 = arith.constant 0 : i32
    return %c0_i32, %c0_i32_0 : i32, i32
  }
  func.func @transform_2(%arg0: i32) -> (i32, i32) {
    %c0_i32 = arith.constant 0 : i32
    %c0_i32_0 = arith.constant 0 : i32
    %c0_i32_1 = arith.constant 0 : i32
    return %c0_i32, %c0_i32_0 : i32, i32
  }
  func.func @transform_3(%arg0: i32) -> (i32, i32) {
    %c0_i32 = arith.constant 0 : i32
    %c0_i32_0 = arith.constant 0 : i32
    return %arg0, %c0_i32 : i32, i32
  }
}

</mosaic_0001>

<llo_original>
// kernel: tpu_custom_call.1
$region0: #{tpu_custom_call.1}
  #allocation0 [shape = 'u32[]', space=smem, size = 0x4, offset = 0x4, fixed_abs, tag = 'smem constant byte address 0x4 - core index']
  #allocation1 [shape = 'u32[144,128]{1,0:T(1,128)}', space=vmem, size = 0x12000, scoped, tag = 'internal scratch']
  %s0 = inlined_call_operand.hbm [shape: f32[128,2048], index: 0, kind: input, shape index: {}]
  %s1 = inlined_call_operand.hbm [shape: f32[2048,128], index: 1, kind: input, shape index: {}]
  %s2 = inlined_call_operand.vmem [shape: f32[1,128], index: 2, kind: input, shape index: {}]
  %s3 = inlined_call_operand.hbm [shape: f32[2,128], index: 3, kind: output, shape index: {}]
  %s4 = sld [smem:[#allocation0]]
  $region30: #{tpu_custom_call.1} parent=0
    _
  %s6 = ssub.s32 1, %s4
  %s7 = scalar_select 0, %s6, %s4
  $region1: #{tpu_custom_call.1} parent=0
    #allocation2 [shape = 'u8[1048576]{0}', space=vmem, size = 0x100000, scoped, tag = 'input window, operand 0, single buffered']
    #allocation3 [shape = 's32[1]{0}', space=sflag, size = 0x4, scoped, tag = 'scoped memory for tpu_custom_call.1']
    #allocation4 [shape = 's32[1]{0}', space=sflag, size = 0x4, scoped, tag = 'scoped memory for tpu_custom_call.1']
    #allocation5 [shape = 'u8[1048576]{0}', space=vmem, size = 0x100000, scoped, tag = 'input window, operand 1, single buffered']
    #allocation6 [shape = 's32[1]{0}', space=sflag, size = 0x4, scoped, tag = 'scoped memory for tpu_custom_call.1']
    #allocation7 [shape = 'u8[1024]{0}', space=vmem, size = 0x400, scoped, tag = 'output window, operand 0, single buffered']
    %8 = vsyncpa [#allocation3], 0
    %9 = vsyncpa [#allocation6], 0
    %10 = vsyncpa [#allocation4], 0
    // Predicated region
    $region2: #{tpu_custom_call.1} parent=1 // pred_check
      _
    $region3: #{tpu_custom_call.1} parent=1 // pred_check_branch
      %12 = sbr.rel (0) target = $region5
    $region4: #{tpu_custom_call.1} parent=1 // pred_region
      %s14 = ssub.s32 32768, 32768
      %15 = vsyncadd [#allocation3], %s14
      %s16 = sshll.u32 [#allocation2], 4
      %s17 = int_to_ptr.vmem [resolvable:$true] %s16
      %22 = dma.hbm_to_vmem [thread:$0]  %s0, 32768, %s17, [#allocation3], 2048, 2048, 128
    $region5: #{tpu_custom_call.1} parent=1 // pred_fallthru
      _
    // Predicated region
    $region6: #{tpu_custom_call.1} parent=1 // pred_check
      _
    $region7: #{tpu_custom_call.1} parent=1 // pred_check_branch
      %24 = sbr.rel (0) target = $region9
    $region8: #{tpu_custom_call.1} parent=1 // pred_region
      %s26 = ssub.s32 32768, 32768
      %27 = vsyncadd [#allocation6], %s26
      %s28 = sshll.u32 [#allocation5], 4
      %s29 = int_to_ptr.vmem [resolvable:$true] %s28
      %34 = dma.hbm_to_vmem [thread:$0]  %s1, 32768, %s29, [#allocation6], 128, 128, 8
    $region9: #{tpu_custom_call.1} parent=1 // pred_fallthru
      _
    // Predicated region
    $region10: #{tpu_custom_call.1} parent=1 // pred_check
      _
    $region11: #{tpu_custom_call.1} parent=1 // pred_check_branch
      %36 = sbr.rel (0) target = $region13
    $region12: #{tpu_custom_call.1} parent=1 // pred_region
      _
    $region13: #{tpu_custom_call.1} parent=1 // pred_fallthru
      _
    // Predicated region
    $region14: #{tpu_custom_call.1} parent=1 // pred_check
      _
    $region15: #{tpu_custom_call.1} parent=1 // pred_check_branch
      %38 = sbr.rel (0) target = $region17
    $region16: #{tpu_custom_call.1} parent=1 // pred_region
      %39 = dma.done [#allocation3], 32768
    $region17: #{tpu_custom_call.1} parent=1 // pred_fallthru
      _
    // Predicated region
    $region18: #{tpu_custom_call.1} parent=1 // pred_check
      _
    $region19: #{tpu_custom_call.1} parent=1 // pred_check_branch
      %41 = sbr.rel (0) target = $region21
    $region20: #{tpu_custom_call.1} parent=1 // pred_region
      %42 = dma.done [#allocation6], 32768
    $region21: #{tpu_custom_call.1} parent=1 // pred_fallthru
      _
    %v43 = vld [vmem:[#allocation2] sm:$0xff]
    %v44 = vld [vmem:[#allocation2 + $0x8] sm:$0xff]
    %v45 = vld [vmem:[#allocation2 + $0x10] sm:$0xff]
    %v46 = vld [vmem:[#allocation2 + $0x18] sm:$0xff]
    %v47 = vld [vmem:[#allocation2 + $0x20] sm:$0xff]
    %v48 = vld [vmem:[#allocation2 + $0x28] sm:$0xff]
    %v49 = vld [vmem:[#allocation2 + $0x30] sm:$0xff]
    %v50 = vld [vmem:[#allocation2 + $0x38] sm:$0xff]
    %v51 = vld [vmem:[#allocation2 + $0x40] sm:$0xff]
    %v52 = vld [vmem:[#allocation2 + $0x48] sm:$0xff]
    %v53 = vld [vmem:[#allocation2 + $0x50] sm:$0xff]
    %v54 = vld [vmem:[#allocation2 + $0x58] sm:$0xff]
    %v55 = vld [vmem:[#allocation2 + $0x60] sm:$0xff]
    %v56 = vld [vmem:[#allocation2 + $0x68] sm:$0xff]
    %v57 = vld [vmem:[#allocation2 + $0x70] sm:$0xff]
    %v58 = vld [vmem:[#allocation2 + $0x78] sm:$0xff]
    %v59 = vld [vmem:[#allocation2 + $0x80] sm:$0xff]
    %v60 = vld [vmem:[#allocation2 + $0x88] sm:$0xff]
    %v61 = vld [vmem:[#allocation2 + $0x90] sm:$0xff]
    %v62 = vld [vmem:[#allocation2 + $0x98] sm:$0xff]
    %v63 = vld [vmem:[#allocation2 + $0xa0] sm:$0xff]
    %v64 = vld [vmem:[#allocation2 + $0xa8] sm:$0xff]
    %v65 = vld [vmem:[#allocation2 + $0xb0] sm:$0xff]
    %v66 = vld [vmem:[#allocation2 + $0xb8] sm:$0xff]
    %v67 = vld [vmem:[#allocation2 + $0xc0] sm:$0xff]
    %v68 = vld [vmem:[#allocation2 + $0xc8] sm:$0xff]
    %v69 = vld [vmem:[#allocation2 + $0xd0] sm:$0xff]
    %v70 = vld [vmem:[#allocation2 + $0xd8] sm:$0xff]
    %v71 = vld [vmem:[#allocation2 + $0xe0] sm:$0xff]
    %v72 = vld [vmem:[#allocation2 + $0xe8] sm:$0xff]
    %v73 = vld [vmem:[#allocation2 + $0xf0] sm:$0xff]
    %v74 = vld [vmem:[#allocation2 + $0xf8] sm:$0xff]
    %v75 = vld [vmem:[#allocation2 + $0x100] sm:$0xff]
    %v76 = vld [vmem:[#allocation2 + $0x108] sm:$0xff]
    %v77 = vld [vmem:[#allocation2 + $0x110] sm:$0xff]
    %v78 = vld [vmem:[#allocation2 + $0x118] sm:$0xff]
    %v79 = vld [vmem:[#allocation2 + $0x120] sm:$0xff]
    %v80 = vld [vmem:[#allocation2 + $0x128] sm:$0xff]
    %v81 = vld [vmem:[#allocation2 + $0x130] sm:$0xff]
    %v82 = vld [vmem:[#allocation2 + $0x138] sm:$0xff]
    %v83 = vld [vmem:[#allocation2 + $0x140] sm:$0xff]
    %v84 = vld [vmem:[#allocation2 + $0x148] sm:$0xff]
    %v85 = vld [vmem:[#allocation2 + $0x150] sm:$0xff]
    %v86 = vld [vmem:[#allocation2 + $0x158] sm:$0xff]
    %v87 = vld [vmem:[#allocation2 + $0x160] sm:$0xff]
    %v88 = vld [vmem:[#allocation2 + $0x168] sm:$0xff]
    %v89 = vld [vmem:[#allocation2 + $0x170] sm:$0xff]
    %v90 = vld [vmem:[#allocation2 + $0x178] sm:$0xff]
    %v91 = vld [vmem:[#allocation2 + $0x180] sm:$0xff]
    %v92 = vld [vmem:[#allocation2 + $0x188] sm:$0xff]
    %v93 = vld [vmem:[#allocation2 + $0x190] sm:$0xff]
    %v94 = vld [vmem:[#allocation2 + $0x198] sm:$0xff]
    %v95 = vld [vmem:[#allocation2 + $0x1a0] sm:$0xff]
    %v96 = vld [vmem:[#allocation2 + $0x1a8] sm:$0xff]
    %v97 = vld [vmem:[#allocation2 + $0x1b0] sm:$0xff]
    %v98 = vld [vmem:[#allocation2 + $0x1b8] sm:$0xff]
    %v99 = vld [vmem:[#allocation2 + $0x1c0] sm:$0xff]
    %v100 = vld [vmem:[#allocation2 + $0x1c8] sm:$0xff]
    %v101 = vld [vmem:[#allocation2 + $0x1d0] sm:$0xff]
    %v102 = vld [vmem:[#allocation2 + $0x1d8] sm:$0xff]
    %v103 = vld [vmem:[#allocation2 + $0x1e0] sm:$0xff]
    %v104 = vld [vmem:[#allocation2 + $0x1e8] sm:$0xff]
    %v105 = vld [vmem:[#allocation2 + $0x1f0] sm:$0xff]
    %v106 = vld [vmem:[#allocation2 + $0x1f8] sm:$0xff]
    %v107 = vld [vmem:[#allocation2 + $0x200] sm:$0xff]
    %v108 = vld [vmem:[#allocation2 + $0x208] sm:$0xff]
    %v109 = vld [vmem:[#allocation2 + $0x210] sm:$0xff]
    %v110 = vld [vmem:[#allocation2 + $0x218] sm:$0xff]
    %v111 = vld [vmem:[#allocation2 + $0x220] sm:$0xff]
    %v112 = vld [vmem:[#allocation2 + $0x228] sm:$0xff]
    %v113 = vld [vmem:[#allocation2 + $0x230] sm:$0xff]
    %v114 = vld [vmem:[#allocation2 + $0x238] sm:$0xff]
    %v115 = vld [vmem:[#allocation2 + $0x240] sm:$0xff]
    %v116 = vld [vmem:[#allocation2 + $0x248] sm:$0xff]
    %v117 = vld [vmem:[#allocation2 + $0x250] sm:$0xff]
    %v118 = vld [vmem:[#allocation2 + $0x258] sm:$0xff]
    %v119 = vld [vmem:[#allocation2 + $0x260] sm:$0xff]
    %v120 = vld [vmem:[#allocation2 + $0x268] sm:$0xff]
    %v121 = vld [vmem:[#allocation2 + $0x270] sm:$0xff]
    %v122 = vld [vmem:[#allocation2 + $0x278] sm:$0xff]
    %v123 = vld [vmem:[#allocation2 + $0x280] sm:$0xff]
    %v124 = vld [vmem:[#allocation2 + $0x288] sm:$0xff]
    %v125 = vld [vmem:[#allocation2 + $0x290] sm:$0xff]
    %v126 = vld [vmem:[#allocation2 + $0x298] sm:$0xff]
    %v127 = vld [vmem:[#allocation2 + $0x2a0] sm:$0xff]
    %v128 = vld [vmem:[#allocation2 + $0x2a8] sm:$0xff]
    %v129 = vld [vmem:[#allocation2 + $0x2b0] sm:$0xff]
    %v130 = vld [vmem:[#allocation2 + $0x2b8] sm:$0xff]
    %v131 = vld [vmem:[#allocation2 + $0x2c0] sm:$0xff]
    %v132 = vld [vmem:[#allocation2 + $0x2c8] sm:$0xff]
    %v133 = vld [vmem:[#allocation2 + $0x2d0] sm:$0xff]
    %v134 = vld [vmem:[#allocation2 + $0x2d8] sm:$0xff]
    %v135 = vld [vmem:[#allocation2 + $0x2e0] sm:$0xff]
    %v136 = vld [vmem:[#allocation2 + $0x2e8] sm:$0xff]
    %v137 = vld [vmem:[#allocation2 + $0x2f0] sm:$0xff]
    %v138 = vld [vmem:[#allocation2 + $0x2f8] sm:$0xff]
    %v139 = vld [vmem:[#allocation2 + $0x300] sm:$0xff]
    %v140 = vld [vmem:[#allocation2 + $0x308] sm:$0xff]
    %v141 = vld [vmem:[#allocation2 + $0x310] sm:$0xff]
    %v142 = vld [vmem:[#allocation2 + $0x318] sm:$0xff]
    %v143 = vld [vmem:[#allocation2 + $0x320] sm:$0xff]
    %v144 = vld [vmem:[#allocation2 + $0x328] sm:$0xff]
    %v145 = vld [vmem:[#allocation2 + $0x330] sm:$0xff]
    %v146 = vld [vmem:[#allocation2 + $0x338] sm:$0xff]
    %v147 = vld [vmem:[#allocation2 + $0x340] sm:$0xff]
    %v148 = vld [vmem:[#allocation2 + $0x348] sm:$0xff]
    %v149 = vld [vmem:[#allocation2 + $0x350] sm:$0xff]
    %v150 = vld [vmem:[#allocation2 + $0x358] sm:$0xff]
    %v151 = vld [vmem:[#allocation2 + $0x360] sm:$0xff]
    %v152 = vld [vmem:[#allocation2 + $0x368] sm:$0xff]
    %v153 = vld [vmem:[#allocation2 + $0x370] sm:$0xff]
    %v154 = vld [vmem:[#allocation2 + $0x378] sm:$0xff]
    %v155 = vld [vmem:[#allocation2 + $0x380] sm:$0xff]
    %v156 = vld [vmem:[#allocation2 + $0x388] sm:$0xff]
    %v157 = vld [vmem:[#allocation2 + $0x390] sm:$0xff]
    %v158 = vld [vmem:[#allocation2 + $0x398] sm:$0xff]
    %v159 = vld [vmem:[#allocation2 + $0x3a0] sm:$0xff]
    %v160 = vld [vmem:[#allocation2 + $0x3a8] sm:$0xff]
    %v161 = vld [vmem:[#allocation2 + $0x3b0] sm:$0xff]
    %v162 = vld [vmem:[#allocation2 + $0x3b8] sm:$0xff]
    %v163 = vld [vmem:[#allocation2 + $0x3c0] sm:$0xff]
    %v164 = vld [vmem:[#allocation2 + $0x3c8] sm:$0xff]
    %v165 = vld [vmem:[#allocation2 + $0x3d0] sm:$0xff]
    %v166 = vld [vmem:[#allocation2 + $0x3d8] sm:$0xff]
    %v167 = vld [vmem:[#allocation2 + $0x3e0] sm:$0xff]
    %v168 = vld [vmem:[#allocation2 + $0x3e8] sm:$0xff]
    %v169 = vld [vmem:[#allocation2 + $0x3f0] sm:$0xff]
    %v170 = vld [vmem:[#allocation2 + $0x3f8] sm:$0xff]
    %v171 = vld [vmem:[#allocation2 + $0x400] sm:$0xff]
    %v172 = vld [vmem:[#allocation2 + $0x408] sm:$0xff]
    %v173 = vld [vmem:[#allocation2 + $0x410] sm:$0xff]
    %v174 = vld [vmem:[#allocation2 + $0x418] sm:$0xff]
    %v175 = vld [vmem:[#allocation2 + $0x420] sm:$0xff]
    %v176 = vld [vmem:[#allocation2 + $0x428] sm:$0xff]
    %v177 = vld [vmem:[#allocation2 + $0x430] sm:$0xff]
    %v178 = vld [vmem:[#allocation2 + $0x438] sm:$0xff]
    %v179 = vld [vmem:[#allocation2 + $0x440] sm:$0xff]
    %v180 = vld [vmem:[#allocation2 + $0x448] sm:$0xff]
    %v181 = vld [vmem:[#allocation2 + $0x450] sm:$0xff]
    %v182 = vld [vmem:[#allocation2 + $0x458] sm:$0xff]
    %v183 = vld [vmem:[#allocation2 + $0x460] sm:$0xff]
    %v184 = vld [vmem:[#allocation2 + $0x468] sm:$0xff]
    %v185 = vld [vmem:[#allocation2 + $0x470] sm:$0xff]
    %v186 = vld [vmem:[#allocation2 + $0x478] sm:$0xff]
    %v187 = vld [vmem:[#allocation2 + $0x480] sm:$0xff]
    %v188 = vld [vmem:[#allocation2 + $0x488] sm:$0xff]
    %v189 = vld [vmem:[#allocation2 + $0x490] sm:$0xff]
    %v190 = vld [vmem:[#allocation2 + $0x498] sm:$0xff]
    %v191 = vld [vmem:[#allocation2 + $0x4a0] sm:$0xff]
    %v192 = vld [vmem:[#allocation2 + $0x4a8] sm:$0xff]
    %v193 = vld [vmem:[#allocation2 + $0x4b0] sm:$0xff]
    %v194 = vld [vmem:[#allocation2 + $0x4b8] sm:$0xff]
    %v195 = vld [vmem:[#allocation2 + $0x4c0] sm:$0xff]
    %v196 = vld [vmem:[#allocation2 + $0x4c8] sm:$0xff]
    %v197 = vld [vmem:[#allocation2 + $0x4d0] sm:$0xff]
    %v198 = vld [vmem:[#allocation2 + $0x4d8] sm:$0xff]
    %v199 = vld [vmem:[#allocation2 + $0x4e0] sm:$0xff]
    %v200 = vld [vmem:[#allocation2 + $0x4e8] sm:$0xff]
    %v201 = vld [vmem:[#allocation2 + $0x4f0] sm:$0xff]
    %v202 = vld [vmem:[#allocation2 + $0x4f8] sm:$0xff]
    %v203 = vld [vmem:[#allocation2 + $0x500] sm:$0xff]
    %v204 = vld [vmem:[#allocation2 + $0x508] sm:$0xff]
    %v205 = vld [vmem:[#allocation2 + $0x510] sm:$0xff]
    %v206 = vld [vmem:[#allocation2 + $0x518] sm:$0xff]
    %v207 = vld [vmem:[#allocation2 + $0x520] sm:$0xff]
    %v208 = vld [vmem:[#allocation2 + $0x528] sm:$0xff]
    %v209 = vld [vmem:[#allocation2 + $0x530] sm:$0xff]
    %v210 = vld [vmem:[#allocation2 + $0x538] sm:$0xff]
    %v211 = vld [vmem:[#allocation2 + $0x540] sm:$0xff]
    %v212 = vld [vmem:[#allocation2 + $0x548] sm:$0xff]
    %v213 = vld [vmem:[#allocation2 + $0x550] sm:$0xff]
    %v214 = vld [vmem:[#allocation2 + $0x558] sm:$0xff]
    %v215 = vld [vmem:[#allocation2 + $0x560] sm:$0xff]
    %v216 = vld [vmem:[#allocation2 + $0x568] sm:$0xff]
    %v217 = vld [vmem:[#allocation2 + $0x570] sm:$0xff]
    %v218 = vld [vmem:[#allocation2 + $0x578] sm:$0xff]
    %v219 = vld [vmem:[#allocation2 + $0x580] sm:$0xff]
    %v220 = vld [vmem:[#allocation2 + $0x588] sm:$0xff]
    %v221 = vld [vmem:[#allocation2 + $0x590] sm:$0xff]
    %v222 = vld [vmem:[#allocation2 + $0x598] sm:$0xff]
    %v223 = vld [vmem:[#allocation2 + $0x5a0] sm:$0xff]
    %v224 = vld [vmem:[#allocation2 + $0x5a8] sm:$0xff]
    %v225 = vld [vmem:[#allocation2 + $0x5b0] sm:$0xff]
    %v226 = vld [vmem:[#allocation2 + $0x5b8] sm:$0xff]
    %v227 = vld [vmem:[#allocation2 + $0x5c0] sm:$0xff]
    %v228 = vld [vmem:[#allocation2 + $0x5c8] sm:$0xff]
    %v229 = vld [vmem:[#allocation2 + $0x5d0] sm:$0xff]
    %v230 = vld [vmem:[#allocation2 + $0x5d8] sm:$0xff]
    %v231 = vld [vmem:[#allocation2 + $0x5e0] sm:$0xff]
    %v232 = vld [vmem:[#allocation2 + $0x5e8] sm:$0xff]
    %v233 = vld [vmem:[#allocation2 + $0x5f0] sm:$0xff]
    %v234 = vld [vmem:[#allocation2 + $0x5f8] sm:$0xff]
    %v235 = vld [vmem:[#allocation2 + $0x600] sm:$0xff]
    %v236 = vld [vmem:[#allocation2 + $0x608] sm:$0xff]
    %v237 = vld [vmem:[#allocation2 + $0x610] sm:$0xff]
    %v238 = vld [vmem:[#allocation2 + $0x618] sm:$0xff]
    %v239 = vld [vmem:[#allocation2 + $0x620] sm:$0xff]
    %v240 = vld [vmem:[#allocation2 + $0x628] sm:$0xff]
    %v241 = vld [vmem:[#allocation2 + $0x630] sm:$0xff]
    %v242 = vld [vmem:[#allocation2 + $0x638] sm:$0xff]
    %v243 = vld [vmem:[#allocation2 + $0x640] sm:$0xff]
    %v244 = vld [vmem:[#allocation2 + $0x648] sm:$0xff]
    %v245 = vld [vmem:[#allocation2 + $0x650] sm:$0xff]
    %v246 = vld [vmem:[#allocation2 + $0x658] sm:$0xff]
    %v247 = vld [vmem:[#allocation2 + $0x660] sm:$0xff]
    %v248 = vld [vmem:[#allocation2 + $0x668] sm:$0xff]
    %v249 = vld [vmem:[#allocation2 + $0x670] sm:$0xff]
    %v250 = vld [vmem:[#allocation2 + $0x678] sm:$0xff]
    %v251 = vld [vmem:[#allocation2 + $0x680] sm:$0xff]
    %v252 = vld [vmem:[#allocation2 + $0x688] sm:$0xff]
    %v253 = vld [vmem:[#allocation2 + $0x690] sm:$0xff]
    %v254 = vld [vmem:[#allocation2 + $0x698] sm:$0xff]
    %v255 = vld [vmem:[#allocation2 + $0x6a0] sm:$0xff]
    %v256 = vld [vmem:[#allocation2 + $0x6a8] sm:$0xff]
    %v257 = vld [vmem:[#allocation2 + $0x6b0] sm:$0xff]
    %v258 = vld [vmem:[#allocation2 + $0x6b8] sm:$0xff]
    %v259 = vld [vmem:[#allocation2 + $0x6c0] sm:$0xff]
    %v260 = vld [vmem:[#allocation2 + $0x6c8] sm:$0xff]
    %v261 = vld [vmem:[#allocation2 + $0x6d0] sm:$0xff]
    %v262 = vld [vmem:[#allocation2 + $0x6d8] sm:$0xff]
    %v263 = vld [vmem:[#allocation2 + $0x6e0] sm:$0xff]
    %v264 = vld [vmem:[#allocation2 + $0x6e8] sm:$0xff]
    %v265 = vld [vmem:[#allocation2 + $0x6f0] sm:$0xff]
    %v266 = vld [vmem:[#allocation2 + $0x6f8] sm:$0xff]
    %v267 = vld [vmem:[#allocation2 + $0x700] sm:$0xff]
    %v268 = vld [vmem:[#allocation2 + $0x708] sm:$0xff]
    %v269 = vld [vmem:[#allocation2 + $0x710] sm:$0xff]
    %v270 = vld [vmem:[#allocation2 + $0x718] sm:$0xff]
    %v271 = vld [vmem:[#allocation2 + $0x720] sm:$0xff]
    %v272 = vld [vmem:[#allocation2 + $0x728] sm:$0xff]
    %v273 = vld [vmem:[#allocation2 + $0x730] sm:$0xff]
    %v274 = vld [vmem:[#allocation2 + $0x738] sm:$0xff]
    %v275 = vld [vmem:[#allocation2 + $0x740] sm:$0xff]
    %v276 = vld [vmem:[#allocation2 + $0x748] sm:$0xff]
    %v277 = vld [vmem:[#allocation2 + $0x750] sm:$0xff]
    %v278 = vld [vmem:[#allocation2 + $0x758] sm:$0xff]
    %v279 = vld [vmem:[#allocation2 + $0x760] sm:$0xff]
    %v280 = vld [vmem:[#allocation2 + $0x768] sm:$0xff]
    %v281 = vld [vmem:[#allocation2 + $0x770] sm:$0xff]
    %v282 = vld [vmem:[#allocation2 + $0x778] sm:$0xff]
    %v283 = vld [vmem:[#allocation2 + $0x780] sm:$0xff]
    %v284 = vld [vmem:[#allocation2 + $0x788] sm:$0xff]
    %v285 = vld [vmem:[#allocation2 + $0x790] sm:$0xff]
    %v286 = vld [vmem:[#allocation2 + $0x798] sm:$0xff]
    %v287 = vld [vmem:[#allocation2 + $0x7a0] sm:$0xff]
    %v288 = vld [vmem:[#allocation2 + $0x7a8] sm:$0xff]
    %v289 = vld [vmem:[#allocation2 + $0x7b0] sm:$0xff]
    %v290 = vld [vmem:[#allocation2 + $0x7b8] sm:$0xff]
    %v291 = vld [vmem:[#allocation2 + $0x7c0] sm:$0xff]
    %v292 = vld [vmem:[#allocation2 + $0x7c8] sm:$0xff]
    %v293 = vld [vmem:[#allocation2 + $0x7d0] sm:$0xff]
    %v294 = vld [vmem:[#allocation2 + $0x7d8] sm:$0xff]
    %v295 = vld [vmem:[#allocation2 + $0x7e0] sm:$0xff]
    %v296 = vld [vmem:[#allocation2 + $0x7e8] sm:$0xff]
    %v297 = vld [vmem:[#allocation2 + $0x7f0] sm:$0xff]
    %v298 = vld [vmem:[#allocation2 + $0x7f8] sm:$0xff]
    %v299 = vld [vmem:[#allocation5] sm:$0xff]
    %v300 = vld [vmem:[#allocation5 + $0x8] sm:$0xff]
    %v301 = vld [vmem:[#allocation5 + $0x10] sm:$0xff]
    %v302 = vld [vmem:[#allocation5 + $0x18] sm:$0xff]
    %v303 = vld [vmem:[#allocation5 + $0x20] sm:$0xff]
    %v304 = vld [vmem:[#allocation5 + $0x28] sm:$0xff]
    %v305 = vld [vmem:[#allocation5 + $0x30] sm:$0xff]
    %v306 = vld [vmem:[#allocation5 + $0x38] sm:$0xff]
    %v307 = vld [vmem:[#allocation5 + $0x40] sm:$0xff]
    %v308 = vld [vmem:[#allocation5 + $0x48] sm:$0xff]
    %v309 = vld [vmem:[#allocation5 + $0x50] sm:$0xff]
    %v310 = vld [vmem:[#allocation5 + $0x58] sm:$0xff]
    %v311 = vld [vmem:[#allocation5 + $0x60] sm:$0xff]
    %v312 = vld [vmem:[#allocation5 + $0x68] sm:$0xff]
    %v313 = vld [vmem:[#allocation5 + $0x70] sm:$0xff]
    %v314 = vld [vmem:[#allocation5 + $0x78] sm:$0xff]
    %v315 = vld [vmem:[#allocation5 + $0x80] sm:$0xff]
    %v316 = vld [vmem:[#allocation5 + $0x88] sm:$0xff]
    %v317 = vld [vmem:[#allocation5 + $0x90] sm:$0xff]
    %v318 = vld [vmem:[#allocation5 + $0x98] sm:$0xff]
    %v319 = vld [vmem:[#allocation5 + $0xa0] sm:$0xff]
    %v320 = vld [vmem:[#allocation5 + $0xa8] sm:$0xff]
    %v321 = vld [vmem:[#allocation5 + $0xb0] sm:$0xff]
    %v322 = vld [vmem:[#allocation5 + $0xb8] sm:$0xff]
    %v323 = vld [vmem:[#allocation5 + $0xc0] sm:$0xff]
    %v324 = vld [vmem:[#allocation5 + $0xc8] sm:$0xff]
    %v325 = vld [vmem:[#allocation5 + $0xd0] sm:$0xff]
    %v326 = vld [vmem:[#allocation5 + $0xd8] sm:$0xff]
    %v327 = vld [vmem:[#allocation5 + $0xe0] sm:$0xff]
    %v328 = vld [vmem:[#allocation5 + $0xe8] sm:$0xff]
    %v329 = vld [vmem:[#allocation5 + $0xf0] sm:$0xff]
    %v330 = vld [vmem:[#allocation5 + $0xf8] sm:$0xff]
    %v331 = vld [vmem:[#allocation5 + $0x100] sm:$0xff]
    %v332 = vld [vmem:[#allocation5 + $0x108] sm:$0xff]
    %v333 = vld [vmem:[#allocation5 + $0x110] sm:$0xff]
    %v334 = vld [vmem:[#allocation5 + $0x118] sm:$0xff]
    %v335 = vld [vmem:[#allocation5 + $0x120] sm:$0xff]
    %v336 = vld [vmem:[#allocation5 + $0x128] sm:$0xff]
    %v337 = vld [vmem:[#allocation5 + $0x130] sm:$0xff]
    %v338 = vld [vmem:[#allocation5 + $0x138] sm:$0xff]
    %v339 = vld [vmem:[#allocation5 + $0x140] sm:$0xff]
    %v340 = vld [vmem:[#allocation5 + $0x148] sm:$0xff]
    %v341 = vld [vmem:[#allocation5 + $0x150] sm:$0xff]
    %v342 = vld [vmem:[#allocation5 + $0x158] sm:$0xff]
    %v343 = vld [vmem:[#allocation5 + $0x160] sm:$0xff]
    %v344 = vld [vmem:[#allocation5 + $0x168] sm:$0xff]
    %v345 = vld [vmem:[#allocation5 + $0x170] sm:$0xff]
    %v346 = vld [vmem:[#allocation5 + $0x178] sm:$0xff]
    %v347 = vld [vmem:[#allocation5 + $0x180] sm:$0xff]
    %v348 = vld [vmem:[#allocation5 + $0x188] sm:$0xff]
    %v349 = vld [vmem:[#allocation5 + $0x190] sm:$0xff]
    %v350 = vld [vmem:[#allocation5 + $0x198] sm:$0xff]
    %v351 = vld [vmem:[#allocation5 + $0x1a0] sm:$0xff]
    %v352 = vld [vmem:[#allocation5 + $0x1a8] sm:$0xff]
    %v353 = vld [vmem:[#allocation5 + $0x1b0] sm:$0xff]
    %v354 = vld [vmem:[#allocation5 + $0x1b8] sm:$0xff]
    %v355 = vld [vmem:[#allocation5 + $0x1c0] sm:$0xff]
    %v356 = vld [vmem:[#allocation5 + $0x1c8] sm:$0xff]
    %v357 = vld [vmem:[#allocation5 + $0x1d0] sm:$0xff]
    %v358 = vld [vmem:[#allocation5 + $0x1d8] sm:$0xff]
    %v359 = vld [vmem:[#allocation5 + $0x1e0] sm:$0xff]
    %v360 = vld [vmem:[#allocation5 + $0x1e8] sm:$0xff]
    %v361 = vld [vmem:[#allocation5 + $0x1f0] sm:$0xff]
    %v362 = vld [vmem:[#allocation5 + $0x1f8] sm:$0xff]
    %v363 = vld [vmem:[#allocation5 + $0x200] sm:$0xff]
    %v364 = vld [vmem:[#allocation5 + $0x208] sm:$0xff]
    %v365 = vld [vmem:[#allocation5 + $0x210] sm:$0xff]
    %v366 = vld [vmem:[#allocation5 + $0x218] sm:$0xff]
    %v367 = vld [vmem:[#allocation5 + $0x220] sm:$0xff]
    %v368 = vld [vmem:[#allocation5 + $0x228] sm:$0xff]
    %v369 = vld [vmem:[#allocation5 + $0x230] sm:$0xff]
    %v370 = vld [vmem:[#allocation5 + $0x238] sm:$0xff]
    %v371 = vld [vmem:[#allocation5 + $0x240] sm:$0xff]
    %v372 = vld [vmem:[#allocation5 + $0x248] sm:$0xff]
    %v373 = vld [vmem:[#allocation5 + $0x250] sm:$0xff]
    %v374 = vld [vmem:[#allocation5 + $0x258] sm:$0xff]
    %v375 = vld [vmem:[#allocation5 + $0x260] sm:$0xff]
    %v376 = vld [vmem:[#allocation5 + $0x268] sm:$0xff]
    %v377 = vld [vmem:[#allocation5 + $0x270] sm:$0xff]
    %v378 = vld [vmem:[#allocation5 + $0x278] sm:$0xff]
    %v379 = vld [vmem:[#allocation5 + $0x280] sm:$0xff]
    %v380 = vld [vmem:[#allocation5 + $0x288] sm:$0xff]
    %v381 = vld [vmem:[#allocation5 + $0x290] sm:$0xff]
    %v382 = vld [vmem:[#allocation5 + $0x298] sm:$0xff]
    %v383 = vld [vmem:[#allocation5 + $0x2a0] sm:$0xff]
    %v384 = vld [vmem:[#allocation5 + $0x2a8] sm:$0xff]
    %v385 = vld [vmem:[#allocation5 + $0x2b0] sm:$0xff]
    %v386 = vld [vmem:[#allocation5 + $0x2b8] sm:$0xff]
    %v387 = vld [vmem:[#allocation5 + $0x2c0] sm:$0xff]
    %v388 = vld [vmem:[#allocation5 + $0x2c8] sm:$0xff]
    %v389 = vld [vmem:[#allocation5 + $0x2d0] sm:$0xff]
    %v390 = vld [vmem:[#allocation5 + $0x2d8] sm:$0xff]
    %v391 = vld [vmem:[#allocation5 + $0x2e0] sm:$0xff]
    %v392 = vld [vmem:[#allocation5 + $0x2e8] sm:$0xff]
    %v393 = vld [vmem:[#allocation5 + $0x2f0] sm:$0xff]
    %v394 = vld [vmem:[#allocation5 + $0x2f8] sm:$0xff]
    %v395 = vld [vmem:[#allocation5 + $0x300] sm:$0xff]
    %v396 = vld [vmem:[#allocation5 + $0x308] sm:$0xff]
    %v397 = vld [vmem:[#allocation5 + $0x310] sm:$0xff]
    %v398 = vld [vmem:[#allocation5 + $0x318] sm:$0xff]
    %v399 = vld [vmem:[#allocation5 + $0x320] sm:$0xff]
    %v400 = vld [vmem:[#allocation5 + $0x328] sm:$0xff]
    %v401 = vld [vmem:[#allocation5 + $0x330] sm:$0xff]
    %v402 = vld [vmem:[#allocation5 + $0x338] sm:$0xff]
    %v403 = vld [vmem:[#allocation5 + $0x340] sm:$0xff]
    %v404 = vld [vmem:[#allocation5 + $0x348] sm:$0xff]
    %v405 = vld [vmem:[#allocation5 + $0x350] sm:$0xff]
    %v406 = vld [vmem:[#allocation5 + $0x358] sm:$0xff]
    %v407 = vld [vmem:[#allocation5 + $0x360] sm:$0xff]
    %v408 = vld [vmem:[#allocation5 + $0x368] sm:$0xff]
    %v409 = vld [vmem:[#allocation5 + $0x370] sm:$0xff]
    %v410 = vld [vmem:[#allocation5 + $0x378] sm:$0xff]
    %v411 = vld [vmem:[#allocation5 + $0x380] sm:$0xff]
    %v412 = vld [vmem:[#allocation5 + $0x388] sm:$0xff]
    %v413 = vld [vmem:[#allocation5 + $0x390] sm:$0xff]
    %v414 = vld [vmem:[#allocation5 + $0x398] sm:$0xff]
    %v415 = vld [vmem:[#allocation5 + $0x3a0] sm:$0xff]
    %v416 = vld [vmem:[#allocation5 + $0x3a8] sm:$0xff]
    %v417 = vld [vmem:[#allocation5 + $0x3b0] sm:$0xff]
    %v418 = vld [vmem:[#allocation5 + $0x3b8] sm:$0xff]
    %v419 = vld [vmem:[#allocation5 + $0x3c0] sm:$0xff]
    %v420 = vld [vmem:[#allocation5 + $0x3c8] sm:$0xff]
    %v421 = vld [vmem:[#allocation5 + $0x3d0] sm:$0xff]
    %v422 = vld [vmem:[#allocation5 + $0x3d8] sm:$0xff]
    %v423 = vld [vmem:[#allocation5 + $0x3e0] sm:$0xff]
    %v424 = vld [vmem:[#allocation5 + $0x3e8] sm:$0xff]
    %v425 = vld [vmem:[#allocation5 + $0x3f0] sm:$0xff]
    %v426 = vld [vmem:[#allocation5 + $0x3f8] sm:$0xff]
    %v427 = vld [vmem:[#allocation5 + $0x400] sm:$0xff]
    %v428 = vld [vmem:[#allocation5 + $0x408] sm:$0xff]
    %v429 = vld [vmem:[#allocation5 + $0x410] sm:$0xff]
    %v430 = vld [vmem:[#allocation5 + $0x418] sm:$0xff]
    %v431 = vld [vmem:[#allocation5 + $0x420] sm:$0xff]
    %v432 = vld [vmem:[#allocation5 + $0x428] sm:$0xff]
    %v433 = vld [vmem:[#allocation5 + $0x430] sm:$0xff]
    %v434 = vld [vmem:[#allocation5 + $0x438] sm:$0xff]
    %v435 = vld [vmem:[#allocation5 + $0x440] sm:$0xff]
    %v436 = vld [vmem:[#allocation5 + $0x448] sm:$0xff]
    %v437 = vld [vmem:[#allocation5 + $0x450] sm:$0xff]
    %v438 = vld [vmem:[#allocation5 + $0x458] sm:$0xff]
    %v439 = vld [vmem:[#allocation5 + $0x460] sm:$0xff]
    %v440 = vld [vmem:[#allocation5 + $0x468] sm:$0xff]
    %v441 = vld [vmem:[#allocation5 + $0x470] sm:$0xff]
    %v442 = vld [vmem:[#allocation5 + $0x478] sm:$0xff]
    %v443 = vld [vmem:[#allocation5 + $0x480] sm:$0xff]
    %v444 = vld [vmem:[#allocation5 + $0x488] sm:$0xff]
    %v445 = vld [vmem:[#allocation5 + $0x490] sm:$0xff]
    %v446 = vld [vmem:[#allocation5 + $0x498] sm:$0xff]
    %v447 = vld [vmem:[#allocation5 + $0x4a0] sm:$0xff]
    %v448 = vld [vmem:[#allocation5 + $0x4a8] sm:$0xff]
    %v449 = vld [vmem:[#allocation5 + $0x4b0] sm:$0xff]
    %v450 = vld [vmem:[#allocation5 + $0x4b8] sm:$0xff]
    %v451 = vld [vmem:[#allocation5 + $0x4c0] sm:$0xff]
    %v452 = vld [vmem:[#allocation5 + $0x4c8] sm:$0xff]
    %v453 = vld [vmem:[#allocation5 + $0x4d0] sm:$0xff]
    %v454 = vld [vmem:[#allocation5 + $0x4d8] sm:$0xff]
    %v455 = vld [vmem:[#allocation5 + $0x4e0] sm:$0xff]
    %v456 = vld [vmem:[#allocation5 + $0x4e8] sm:$0xff]
    %v457 = vld [vmem:[#allocation5 + $0x4f0] sm:$0xff]
    %v458 = vld [vmem:[#allocation5 + $0x4f8] sm:$0xff]
    %v459 = vld [vmem:[#allocation5 + $0x500] sm:$0xff]
    %v460 = vld [vmem:[#allocation5 + $0x508] sm:$0xff]
    %v461 = vld [vmem:[#allocation5 + $0x510] sm:$0xff]
    %v462 = vld [vmem:[#allocation5 + $0x518] sm:$0xff]
    %v463 = vld [vmem:[#allocation5 + $0x520] sm:$0xff]
    %v464 = vld [vmem:[#allocation5 + $0x528] sm:$0xff]
    %v465 = vld [vmem:[#allocation5 + $0x530] sm:$0xff]
    %v466 = vld [vmem:[#allocation5 + $0x538] sm:$0xff]
    %v467 = vld [vmem:[#allocation5 + $0x540] sm:$0xff]
    %v468 = vld [vmem:[#allocation5 + $0x548] sm:$0xff]
    %v469 = vld [vmem:[#allocation5 + $0x550] sm:$0xff]
    %v470 = vld [vmem:[#allocation5 + $0x558] sm:$0xff]
    %v471 = vld [vmem:[#allocation5 + $0x560] sm:$0xff]
    %v472 = vld [vmem:[#allocation5 + $0x568] sm:$0xff]
    %v473 = vld [vmem:[#allocation5 + $0x570] sm:$0xff]
    %v474 = vld [vmem:[#allocation5 + $0x578] sm:$0xff]
    %v475 = vld [vmem:[#allocation5 + $0x580] sm:$0xff]
    %v476 = vld [vmem:[#allocation5 + $0x588] sm:$0xff]
    %v477 = vld [vmem:[#allocation5 + $0x590] sm:$0xff]
    %v478 = vld [vmem:[#allocation5 + $0x598] sm:$0xff]
    %v479 = vld [vmem:[#allocation5 + $0x5a0] sm:$0xff]
    %v480 = vld [vmem:[#allocation5 + $0x5a8] sm:$0xff]
    %v481 = vld [vmem:[#allocation5 + $0x5b0] sm:$0xff]
    %v482 = vld [vmem:[#allocation5 + $0x5b8] sm:$0xff]
    %v483 = vld [vmem:[#allocation5 + $0x5c0] sm:$0xff]
    %v484 = vld [vmem:[#allocation5 + $0x5c8] sm:$0xff]
    %v485 = vld [vmem:[#allocation5 + $0x5d0] sm:$0xff]
    %v486 = vld [vmem:[#allocation5 + $0x5d8] sm:$0xff]
    %v487 = vld [vmem:[#allocation5 + $0x5e0] sm:$0xff]
    %v488 = vld [vmem:[#allocation5 + $0x5e8] sm:$0xff]
    %v489 = vld [vmem:[#allocation5 + $0x5f0] sm:$0xff]
    %v490 = vld [vmem:[#allocation5 + $0x5f8] sm:$0xff]
    %v491 = vld [vmem:[#allocation5 + $0x600] sm:$0xff]
    %v492 = vld [vmem:[#allocation5 + $0x608] sm:$0xff]
    %v493 = vld [vmem:[#allocation5 + $0x610] sm:$0xff]
    %v494 = vld [vmem:[#allocation5 + $0x618] sm:$0xff]
    %v495 = vld [vmem:[#allocation5 + $0x620] sm:$0xff]
    %v496 = vld [vmem:[#allocation5 + $0x628] sm:$0xff]
    %v497 = vld [vmem:[#allocation5 + $0x630] sm:$0xff]
    %v498 = vld [vmem:[#allocation5 + $0x638] sm:$0xff]
    %v499 = vld [vmem:[#allocation5 + $0x640] sm:$0xff]
    %v500 = vld [vmem:[#allocation5 + $0x648] sm:$0xff]
    %v501 = vld [vmem:[#allocation5 + $0x650] sm:$0xff]
    %v502 = vld [vmem:[#allocation5 + $0x658] sm:$0xff]
    %v503 = vld [vmem:[#allocation5 + $0x660] sm:$0xff]
    %v504 = vld [vmem:[#allocation5 + $0x668] sm:$0xff]
    %v505 = vld [vmem:[#allocation5 + $0x670] sm:$0xff]
    %v506 = vld [vmem:[#allocation5 + $0x678] sm:$0xff]
    %v507 = vld [vmem:[#allocation5 + $0x680] sm:$0xff]
    %v508 = vld [vmem:[#allocation5 + $0x688] sm:$0xff]
    %v509 = vld [vmem:[#allocation5 + $0x690] sm:$0xff]
    %v510 = vld [vmem:[#allocation5 + $0x698] sm:$0xff]
    %v511 = vld [vmem:[#allocation5 + $0x6a0] sm:$0xff]
    %v512 = vld [vmem:[#allocation5 + $0x6a8] sm:$0xff]
    %v513 = vld [vmem:[#allocation5 + $0x6b0] sm:$0xff]
    %v514 = vld [vmem:[#allocation5 + $0x6b8] sm:$0xff]
    %v515 = vld [vmem:[#allocation5 + $0x6c0] sm:$0xff]
    %v516 = vld [vmem:[#allocation5 + $0x6c8] sm:$0xff]
    %v517 = vld [vmem:[#allocation5 + $0x6d0] sm:$0xff]
    %v518 = vld [vmem:[#allocation5 + $0x6d8] sm:$0xff]
    %v519 = vld [vmem:[#allocation5 + $0x6e0] sm:$0xff]
    %v520 = vld [vmem:[#allocation5 + $0x6e8] sm:$0xff]
    %v521 = vld [vmem:[#allocation5 + $0x6f0] sm:$0xff]
    %v522 = vld [vmem:[#allocation5 + $0x6f8] sm:$0xff]
    %v523 = vld [vmem:[#allocation5 + $0x700] sm:$0xff]
    %v524 = vld [vmem:[#allocation5 + $0x708] sm:$0xff]
    %v525 = vld [vmem:[#allocation5 + $0x710] sm:$0xff]
    %v526 = vld [vmem:[#allocation5 + $0x718] sm:$0xff]
    %v527 = vld [vmem:[#allocation5 + $0x720] sm:$0xff]
    %v528 = vld [vmem:[#allocation5 + $0x728] sm:$0xff]
    %v529 = vld [vmem:[#allocation5 + $0x730] sm:$0xff]
    %v530 = vld [vmem:[#allocation5 + $0x738] sm:$0xff]
    %v531 = vld [vmem:[#allocation5 + $0x740] sm:$0xff]
    %v532 = vld [vmem:[#allocation5 + $0x748] sm:$0xff]
    %v533 = vld [vmem:[#allocation5 + $0x750] sm:$0xff]
    %v534 = vld [vmem:[#allocation5 + $0x758] sm:$0xff]
    %v535 = vld [vmem:[#allocation5 + $0x760] sm:$0xff]
    %v536 = vld [vmem:[#allocation5 + $0x768] sm:$0xff]
    %v537 = vld [vmem:[#allocation5 + $0x770] sm:$0xff]
    %v538 = vld [vmem:[#allocation5 + $0x778] sm:$0xff]
    %v539 = vld [vmem:[#allocation5 + $0x780] sm:$0xff]
    %v540 = vld [vmem:[#allocation5 + $0x788] sm:$0xff]
    %v541 = vld [vmem:[#allocation5 + $0x790] sm:$0xff]
    %v542 = vld [vmem:[#allocation5 + $0x798] sm:$0xff]
    %v543 = vld [vmem:[#allocation5 + $0x7a0] sm:$0xff]
    %v544 = vld [vmem:[#allocation5 + $0x7a8] sm:$0xff]
    %v545 = vld [vmem:[#allocation5 + $0x7b0] sm:$0xff]
    %v546 = vld [vmem:[#allocation5 + $0x7b8] sm:$0xff]
    %v547 = vld [vmem:[#allocation5 + $0x7c0] sm:$0xff]
    %v548 = vld [vmem:[#allocation5 + $0x7c8] sm:$0xff]
    %v549 = vld [vmem:[#allocation5 + $0x7d0] sm:$0xff]
    %v550 = vld [vmem:[#allocation5 + $0x7d8] sm:$0xff]
    %v551 = vld [vmem:[#allocation5 + $0x7e0] sm:$0xff]
    %v552 = vld [vmem:[#allocation5 + $0x7e8] sm:$0xff]
    %v553 = vld [vmem:[#allocation5 + $0x7f0] sm:$0xff]
    %v554 = vld [vmem:[#allocation5 + $0x7f8] sm:$0xff]
    %555 = vmatprep.subr.mxu0 0.0
    %556 = vmatpush1.msra.mxu0 %v299
    %557 = vmatprep.subr.mxu0 0.0
    %558 = vmatpush1.msra.mxu0 %v300
    %559 = vmatprep.subr.mxu0 0.0
    %560 = vmatpush1.msra.mxu0 %v301
    %561 = vmatprep.subr.mxu0 0.0
    %562 = vmatpush1.msra.mxu0 %v302
    %563 = vmatprep.subr.mxu0 0.0
    %564 = vmatpush1.msra.mxu0 %v303
    %565 = vmatprep.subr.mxu0 0.0
    %566 = vmatpush1.msra.mxu0 %v304
    %567 = vmatprep.subr.mxu0 0.0
    %568 = vmatpush1.msra.mxu0 %v305
    %569 = vmatprep.subr.mxu0 0.0
    %570 = vmatpush1.msra.mxu0 %v306
    %571 = vmatprep.subr.mxu0 0.0
    %572 = vmatpush1.msra.mxu0 %v307
    %573 = vmatprep.subr.mxu0 0.0
    %574 = vmatpush1.msra.mxu0 %v308
    %575 = vmatprep.subr.mxu0 0.0
    %576 = vmatpush1.msra.mxu0 %v309
    %577 = vmatprep.subr.mxu0 0.0
    %578 = vmatpush1.msra.mxu0 %v310
    %579 = vmatprep.subr.mxu0 0.0
    %580 = vmatpush1.msra.mxu0 %v311
    %581 = vmatprep.subr.mxu0 0.0
    %582 = vmatpush1.msra.mxu0 %v312
    %583 = vmatprep.subr.mxu0 0.0
    %584 = vmatpush1.msra.mxu0 %v313
    %585 = vmatprep.subr.mxu0 0.0
    %586 = vmatpush1.msra.mxu0 %v314
    %587 = vmatprep.subr.mxu0 0.0
    %588 = vmatpush1.msra.mxu0 %v315
    %589 = vmatprep.subr.mxu0 0.0
    %590 = vmatpush1.msra.mxu0 %v316
    %591 = vmatprep.subr.mxu0 0.0
    %592 = vmatpush1.msra.mxu0 %v317
    %593 = vmatprep.subr.mxu0 0.0
    %594 = vmatpush1.msra.mxu0 %v318
    %595 = vmatprep.subr.mxu0 0.0
    %596 = vmatpush1.msra.mxu0 %v319
    %597 = vmatprep.subr.mxu0 0.0
    %598 = vmatpush1.msra.mxu0 %v320
    %599 = vmatprep.subr.mxu0 0.0
    %600 = vmatpush1.msra.mxu0 %v321
    %601 = vmatprep.subr.mxu0 0.0
    %602 = vmatpush1.msra.mxu0 %v322
    %603 = vmatprep.subr.mxu0 0.0
    %604 = vmatpush1.msra.mxu0 %v323
    %605 = vmatprep.subr.mxu0 0.0
    %606 = vmatpush1.msra.mxu0 %v324
    %607 = vmatprep.subr.mxu0 0.0
    %608 = vmatpush1.msra.mxu0 %v325
    %609 = vmatprep.subr.mxu0 0.0
    %610 = vmatpush1.msra.mxu0 %v326
    %611 = vmatprep.subr.mxu0 0.0
    %612 = vmatpush1.msra.mxu0 %v327
    %613 = vmatprep.subr.mxu0 0.0
    %614 = vmatpush1.msra.mxu0 %v328
    %615 = vmatprep.subr.mxu0 0.0
    %616 = vmatpush1.msra.mxu0 %v329
    %617 = vmatprep.subr.mxu0 0.0
    %618 = vmatpush1.msra.mxu0 %v330
    %619 = vmatprep.mubr.f32.mxu0 %v44
    %620 = vmatmul.mubr.f32.gmra.mrb[0].mxu0 %v43
    %v621 = vpop.f32.mrb[0].mxu0
    %v622 = vadd.f32 0.0, %v621
    %v623 = vpop.f32.mrb[0].mxu0
    %624 = vmatprep.mubr.f32.mxu0 %v60
    %625 = vmatmul.mubr.f32.gmra.mrb[0].mxu0 %v59
    %v626 = vpop.f32.mrb[0].mxu0
    %v627 = vadd.f32 0.0, %v626
    %v628 = vpop.f32.mrb[0].mxu0
    %629 = vmatprep.mubr.f32.mxu0 %v76
    %630 = vmatmul.mubr.f32.gmra.mrb[0].mxu0 %v75
    %v631 = vpop.f32.mrb[0].mxu0
    %v632 = vadd.f32 0.0, %v631
    %v633 = vpop.f32.mrb[0].mxu0
    %634 = vmatprep.mubr.f32.mxu0 %v92
    %635 = vmatmul.mubr.f32.gmra.mrb[0].mxu0 %v91
    %v636 = vpop.f32.mrb[0].mxu0
    %v637 = vadd.f32 0.0, %v636
    %v638 = vpop.f32.mrb[0].mxu0
    %639 = vmatprep.mubr.f32.mxu0 %v108
    %640 = vmatmul.mubr.f32.gmra.mrb[0].mxu0 %v107
    %v641 = vpop.f32.mrb[0].mxu0
    %v642 = vadd.f32 0.0, %v641
    %v643 = vpop.f32.mrb[0].mxu0
    %644 = vmatprep.mubr.f32.mxu0 %v124
    %645 = vmatmul.mubr.f32.gmra.mrb[0].mxu0 %v123
    %v646 = vpop.f32.mrb[0].mxu0
    %v647 = vadd.f32 0.0, %v646
    %v648 = vpop.f32.mrb[0].mxu0
    %649 = vmatprep.mubr.f32.mxu0 %v140
    %650 = vmatmul.mubr.f32.gmra.mrb[0].mxu0 %v139
    %v651 = vpop.f32.mrb[0].mxu0
    %v652 = vadd.f32 0.0, %v651
    %v653 = vpop.f32.mrb[0].mxu0
    %654 = vmatprep.mubr.f32.mxu0 %v156
    %655 = vmatmul.mubr.f32.gmra.mrb[0].mxu0 %v155
    %v656 = vpop.f32.mrb[0].mxu0
    %v657 = vadd.f32 0.0, %v656
    %v658 = vpop.f32.mrb[0].mxu0
    %659 = vmatprep.mubr.f32.mxu0 %v172
    %660 = vmatmul.mubr.f32.gmra.mrb[0].mxu0 %v171
    %v661 = vpop.f32.mrb[0].mxu0
    %v662 = vadd.f32 0.0, %v661
    %v663 = vpop.f32.mrb[0].mxu0
    %664 = vmatprep.mubr.f32.mxu0 %v188
    %665 = vmatmul.mubr.f32.gmra.mrb[0].mxu0 %v187
    %v666 = vpop.f32.mrb[0].mxu0
    %v667 = vadd.f32 0.0, %v666
    %v668 = vpop.f32.mrb[0].mxu0
    %669 = vmatprep.mubr.f32.mxu0 %v204
    %670 = vmatmul.mubr.f32.gmra.mrb[0].mxu0 %v203
    %v671 = vpop.f32.mrb[0].mxu0
    %v672 = vadd.f32 0.0, %v671
    %v673 = vpop.f32.mrb[0].mxu0
    %674 = vmatprep.mubr.f32.mxu0 %v220
    %675 = vmatmul.mubr.f32.gmra.mrb[0].mxu0 %v219
    %v676 = vpop.f32.mrb[0].mxu0
    %v677 = vadd.f32 0.0, %v676
    %v678 = vpop.f32.mrb[0].mxu0
    %679 = vmatprep.mubr.f32.mxu0 %v236
    %680 = vmatmul.mubr.f32.gmra.mrb[0].mxu0 %v235
    %v681 = vpop.f32.mrb[0].mxu0
    %v682 = vadd.f32 0.0, %v681
    %v683 = vpop.f32.mrb[0].mxu0
    %684 = vmatprep.mubr.f32.mxu0 %v252
    %685 = vmatmul.mubr.f32.gmra.mrb[0].mxu0 %v251
    %v686 = vpop.f32.mrb[0].mxu0
    %v687 = vadd.f32 0.0, %v686
    %v688 = vpop.f32.mrb[0].mxu0
    %689 = vmatprep.mubr.f32.mxu0 %v268
    %690 = vmatmul.mubr.f32.gmra.mrb[0].mxu0 %v267
    %v691 = vpop.f32.mrb[0].mxu0
    %v692 = vadd.f32 0.0, %v691
    %v693 = vpop.f32.mrb[0].mxu0
    %694 = vmatprep.mubr.f32.mxu0 %v284
    %695 = vmatmul.mubr.f32.gmra.mrb[0].mxu0 %v283
    %v696 = vpop.f32.mrb[0].mxu0
    %v697 = vadd.f32 0.0, %v696
    %v698 = vpop.f32.mrb[0].mxu0
    %699 = vdwg.mxu0
    %700 = vmatprep.subr.mxu0 0.0
    %701 = vmatpush1.msra.mxu0 %v331
    %702 = vmatprep.subr.mxu0 0.0
    %703 = vmatpush1.msra.mxu0 %v332
    %704 = vmatprep.subr.mxu0 0.0
    %705 = vmatpush1.msra.mxu0 %v333
    %706 = vmatprep.subr.mxu0 0.0
    %707 = vmatpush1.msra.mxu0 %v334
    %708 = vmatprep.subr.mxu0 0.0
    %709 = vmatpush1.msra.mxu0 %v335
    %710 = vmatprep.subr.mxu0 0.0
    %711 = vmatpush1.msra.mxu0 %v336
    %712 = vmatprep.subr.mxu0 0.0
    %713 = vmatpush1.msra.mxu0 %v337
    %714 = vmatprep.subr.mxu0 0.0
    %715 = vmatpush1.msra.mxu0 %v338
    %716 = vmatprep.subr.mxu0 0.0
    %717 = vmatpush1.msra.mxu0 %v339
    %718 = vmatprep.subr.mxu0 0.0
    %719 = vmatpush1.msra.mxu0 %v340
    %720 = vmatprep.subr.mxu0 0.0
    %721 = vmatpush1.msra.mxu0 %v341
    %722 = vmatprep.subr.mxu0 0.0
    %723 = vmatpush1.msra.mxu0 %v342
    %724 = vmatprep.subr.mxu0 0.0
    %725 = vmatpush1.msra.mxu0 %v343
    %726 = vmatprep.subr.mxu0 0.0
    %727 = vmatpush1.msra.mxu0 %v344
    %728 = vmatprep.subr.mxu0 0.0
    %729 = vmatpush1.msra.mxu0 %v345
    %730 = vmatprep.subr.mxu0 0.0
    %731 = vmatpush1.msra.mxu0 %v346
    %732 = vmatprep.subr.mxu0 0.0
    %733 = vmatpush1.msra.mxu0 %v347
    %734 = vmatprep.subr.mxu0 0.0
    %735 = vmatpush1.msra.mxu0 %v348
    %736 = vmatprep.subr.mxu0 0.0
    %737 = vmatpush1.msra.mxu0 %v349
    %738 = vmatprep.subr.mxu0 0.0
    %739 = vmatpush1.msra.mxu0 %v350
    %740 = vmatprep.subr.mxu0 0.0
    %741 = vmatpush1.msra.mxu0 %v351
    %742 = vmatprep.subr.mxu0 0.0
    %743 = vmatpush1.msra.mxu0 %v352
    %744 = vmatprep.subr.mxu0 0.0
    %745 = vmatpush1.msra.mxu0 %v353
    %746 = vmatprep.subr.mxu0 0.0
    %747 = vmatpush1.msra.mxu0 %v354
    %748 = vmatprep.subr.mxu0 0.0
    %749 = vmatpush1.msra.mxu0 %v355
    %750 = vmatprep.subr.mxu0 0.0
    %751 = vmatpush1.msra.mxu0 %v356
    %752 = vmatprep.subr.mxu0 0.0
    %753 = vmatpush1.msra.mxu0 %v357
    %754 = vmatprep.subr.mxu0 0.0
    %755 = vmatpush1.msra.mxu0 %v358
    %756 = vmatprep.subr.mxu0 0.0
    %757 = vmatpush1.msra.mxu0 %v359
    %758 = vmatprep.subr.mxu0 0.0
    %759 = vmatpush1.msra.mxu0 %v360
    %760 = vmatprep.subr.mxu0 0.0
    %761 = vmatpush1.msra.mxu0 %v361
    %762 = vmatprep.subr.mxu0 0.0
    %763 = vmatpush1.msra.mxu0 %v362
    %764 = vmatprep.mubr.f32.mxu0 %v46
    %765 = vmatmul.mubr.f32.gmra.mrb[0].mxu0 %v45
    %v766 = vpop.f32.mrb[0].mxu0
    %v767 = vadd.f32 %v622, %v766
    %v768 = vpop.f32.mrb[0].mxu0
    %769 = vmatprep.mubr.f32.mxu0 %v62
    %770 = vmatmul.mubr.f32.gmra.mrb[0].mxu0 %v61
    %v771 = vpop.f32.mrb[0].mxu0
    %v772 = vadd.f32 %v627, %v771
    %v773 = vpop.f32.mrb[0].mxu0
    %774 = vmatprep.mubr.f32.mxu0 %v78
    %775 = vmatmul.mubr.f32.gmra.mrb[0].mxu0 %v77
    %v776 = vpop.f32.mrb[0].mxu0
    %v777 = vadd.f32 %v632, %v776
    %v778 = vpop.f32.mrb[0].mxu0
    %779 = vmatprep.mubr.f32.mxu0 %v94
    %780 = vmatmul.mubr.f32.gmra.mrb[0].mxu0 %v93
    %v781 = vpop.f32.mrb[0].mxu0
    %v782 = vadd.f32 %v637, %v781
    %v783 = vpop.f32.mrb[0].mxu0
    %784 = vmatprep.mubr.f32.mxu0 %v110
    %785 = vmatmul.mubr.f32.gmra.mrb[0].mxu0 %v109
    %v786 = vpop.f32.mrb[0].mxu0
    %v787 = vadd.f32 %v642, %v786
    %v788 = vpop.f32.mrb[0].mxu0
    %789 = vmatprep.mubr.f32.mxu0 %v126
    %790 = vmatmul.mubr.f32.gmra.mrb[0].mxu0 %v125
    %v791 = vpop.f32.mrb[0].mxu0
    %v792 = vadd.f32 %v647, %v791
    %v793 = vpop.f32.mrb[0].mxu0
    %794 = vmatprep.mubr.f32.mxu0 %v142
    %795 = vmatmul.mubr.f32.gmra.mrb[0].mxu0 %v141
    %v796 = vpop.f32.mrb[0].mxu0
    %v797 = vadd.f32 %v652, %v796
    %v798 = vpop.f32.mrb[0].mxu0
    %799 = vmatprep.mubr.f32.mxu0 %v158
    %800 = vmatmul.mubr.f32.gmra.mrb[0].mxu0 %v157
    %v801 = vpop.f32.mrb[0].mxu0
    %v802 = vadd.f32 %v657, %v801
    %v803 = vpop.f32.mrb[0].mxu0
    %804 = vmatprep.mubr.f32.mxu0 %v174
    %805 = vmatmul.mubr.f32.gmra.mrb[0].mxu0 %v173
    %v806 = vpop.f32.mrb[0].mxu0
    %v807 = vadd.f32 %v662, %v806
    %v808 = vpop.f32.mrb[0].mxu0
    %809 = vmatprep.mubr.f32.mxu0 %v190
    %810 = vmatmul.mubr.f32.gmra.mrb[0].mxu0 %v189
    %v811 = vpop.f32.mrb[0].mxu0
    %v812 = vadd.f32 %v667, %v811
    %v813 = vpop.f32.mrb[0].mxu0
    %814 = vmatprep.mubr.f32.mxu0 %v206
    %815 = vmatmul.mubr.f32.gmra.mrb[0].mxu0 %v205
    %v816 = vpop.f32.mrb[0].mxu0
    %v817 = vadd.f32 %v672, %v816
    %v818 = vpop.f32.mrb[0].mxu0
    %819 = vmatprep.mubr.f32.mxu0 %v222
    %820 = vmatmul.mubr.f32.gmra.mrb[0].mxu0 %v221
    %v821 = vpop.f32.mrb[0].mxu0
    %v822 = vadd.f32 %v677, %v821
    %v823 = vpop.f32.mrb[0].mxu0
    %824 = vmatprep.mubr.f32.mxu0 %v238
    %825 = vmatmul.mubr.f32.gmra.mrb[0].mxu0 %v237
    %v826 = vpop.f32.mrb[0].mxu0
    %v827 = vadd.f32 %v682, %v826
    %v828 = vpop.f32.mrb[0].mxu0
    %829 = vmatprep.mubr.f32.mxu0 %v254
    %830 = vmatmul.mubr.f32.gmra.mrb[0].mxu0 %v253
    %v831 = vpop.f32.mrb[0].mxu0
    %v832 = vadd.f32 %v687, %v831
    %v833 = vpop.f32.mrb[0].mxu0
    %834 = vmatprep.mubr.f32.mxu0 %v270
    %835 = vmatmul.mubr.f32.gmra.mrb[0].mxu0 %v269
    %v836 = vpop.f32.mrb[0].mxu0
    %v837 = vadd.f32 %v692, %v836
    %v838 = vpop.f32.mrb[0].mxu0
    %839 = vmatprep.mubr.f32.mxu0 %v286
    %840 = vmatmul.mubr.f32.gmra.mrb[0].mxu0 %v285
    %v841 = vpop.f32.mrb[0].mxu0
    %v842 = vadd.f32 %v697, %v841
    %v843 = vpop.f32.mrb[0].mxu0
    %844 = vdwg.mxu0
    %845 = vmatprep.subr.mxu0 0.0
    %846 = vmatpush1.msra.mxu0 %v363
    %847 = vmatprep.subr.mxu0 0.0
    %848 = vmatpush1.msra.mxu0 %v364
    %849 = vmatprep.subr.mxu0 0.0
    %850 = vmatpush1.msra.mxu0 %v365
    %851 = vmatprep.subr.mxu0 0.0
    %852 = vmatpush1.msra.mxu0 %v366
    %853 = vmatprep.subr.mxu0 0.0
    %854 = vmatpush1.msra.mxu0 %v367
    %855 = vmatprep.subr.mxu0 0.0
    %856 = vmatpush1.msra.mxu0 %v368
    %857 = vmatprep.subr.mxu0 0.0
    %858 = vmatpush1.msra.mxu0 %v369
    %859 = vmatprep.subr.mxu0 0.0
    %860 = vmatpush1.msra.mxu0 %v370
    %861 = vmatprep.subr.mxu0 0.0
    %862 = vmatpush1.msra.mxu0 %v371
    %863 = vmatprep.subr.mxu0 0.0
    %864 = vmatpush1.msra.mxu0 %v372
    %865 = vmatprep.subr.mxu0 0.0
    %866 = vmatpush1.msra.mxu0 %v373
    %867 = vmatprep.subr.mxu0 0.0
    %868 = vmatpush1.msra.mxu0 %v374
    %869 = vmatprep.subr.mxu0 0.0
    %870 = vmatpush1.msra.mxu0 %v375
    %871 = vmatprep.subr.mxu0 0.0
    %872 = vmatpush1.msra.mxu0 %v376
    %873 = vmatprep.subr.mxu0 0.0
    %874 = vmatpush1.msra.mxu0 %v377
    %875 = vmatprep.subr.mxu0 0.0
    %876 = vmatpush1.msra.mxu0 %v378
    %877 = vmatprep.subr.mxu0 0.0
    %878 = vmatpush1.msra.mxu0 %v379
    %879 = vmatprep.subr.mxu0 0.0
    %880 = vmatpush1.msra.mxu0 %v380
    %881 = vmatprep.subr.mxu0 0.0
    %882 = vmatpush1.msra.mxu0 %v381
    %883 = vmatprep.subr.mxu0 0.0
    %884 = vmatpush1.msra.mxu0 %v382
    %885 = vmatprep.subr.mxu0 0.0
    %886 = vmatpush1.msra.mxu0 %v383
    %887 = vmatprep.subr.mxu0 0.0
    %888 = vmatpush1.msra.mxu0 %v384
    %889 = vmatprep.subr.mxu0 0.0
    %890 = vmatpush1.msra.mxu0 %v385
    %891 = vmatprep.subr.mxu0 0.0
    %892 = vmatpush1.msra.mxu0 %v386
    %893 = vmatprep.subr.mxu0 0.0
    %894 = vmatpush1.msra.mxu0 %v387
    %895 = vmatprep.subr.mxu0 0.0
    %896 = vmatpush1.msra.mxu0 %v388
    %897 = vmatprep.subr.mxu0 0.0
    %898 = vmatpush1.msra.mxu0 %v389
    %899 = vmatprep.subr.mxu0 0.0
    %900 = vmatpush1.msra.mxu0 %v390
    %901 = vmatprep.subr.mxu0 0.0
    %902 = vmatpush1.msra.mxu0 %v391
    %903 = vmatprep.subr.mxu0 0.0
    %904 = vmatpush1.msra.mxu0 %v392
    %905 = vmatprep.subr.mxu0 0.0
    %906 = vmatpush1.msra.mxu0 %v393
    %907 = vmatprep.subr.mxu0 0.0
    %908 = vmatpush1.msra.mxu0 %v394
    %909 = vmatprep.mubr.f32.mxu0 %v48
    %910 = vmatmul.mubr.f32.gmra.mrb[0].mxu0 %v47
    %v911 = vpop.f32.mrb[0].mxu0
    %v912 = vadd.f32 %v767, %v911
    %v913 = vpop.f32.mrb[0].mxu0
    %914 = vmatprep.mubr.f32.mxu0 %v64
    %915 = vmatmul.mubr.f32.gmra.mrb[0].mxu0 %v63
    %v916 = vpop.f32.mrb[0].mxu0
    %v917 = vadd.f32 %v772, %v916
    %v918 = vpop.f32.mrb[0].mxu0
    %919 = vmatprep.mubr.f32.mxu0 %v80
    %920 = vmatmul.mubr.f32.gmra.mrb[0].mxu0 %v79
    %v921 = vpop.f32.mrb[0].mxu0
    %v922 = vadd.f32 %v777, %v921
    %v923 = vpop.f32.mrb[0].mxu0
    %924 = vmatprep.mubr.f32.mxu0 %v96
    %925 = vmatmul.mubr.f32.gmra.mrb[0].mxu0 %v95
    %v926 = vpop.f32.mrb[0].mxu0
    %v927 = vadd.f32 %v782, %v926
    %v928 = vpop.f32.mrb[0].mxu0
    %929 = vmatprep.mubr.f32.mxu0 %v112
    %930 = vmatmul.mubr.f32.gmra.mrb[0].mxu0 %v111
    %v931 = vpop.f32.mrb[0].mxu0
    %v932 = vadd.f32 %v787, %v931
    %v933 = vpop.f32.mrb[0].mxu0
    %934 = vmatprep.mubr.f32.mxu0 %v128
    %935 = vmatmul.mubr.f32.gmra.mrb[0].mxu0 %v127
    %v936 = vpop.f32.mrb[0].mxu0
    %v937 = vadd.f32 %v792, %v936
    %v938 = vpop.f32.mrb[0].mxu0
    %939 = vmatprep.mubr.f32.mxu0 %v144
    %940 = vmatmul.mubr.f32.gmra.mrb[0].mxu0 %v143
    %v941 = vpop.f32.mrb[0].mxu0
    %v942 = vadd.f32 %v797, %v941
    %v943 = vpop.f32.mrb[0].mxu0
    %944 = vmatprep.mubr.f32.mxu0 %v160
    %945 = vmatmul.mubr.f32.gmra.mrb[0].mxu0 %v159
    %v946 = vpop.f32.mrb[0].mxu0
    %v947 = vadd.f32 %v802, %v946
    %v948 = vpop.f32.mrb[0].mxu0
    %949 = vmatprep.mubr.f32.mxu0 %v176
    %950 = vmatmul.mubr.f32.gmra.mrb[0].mxu0 %v175
    %v951 = vpop.f32.mrb[0].mxu0
    %v952 = vadd.f32 %v807, %v951
    %v953 = vpop.f32.mrb[0].mxu0
    %954 = vmatprep.mubr.f32.mxu0 %v192
    %955 = vmatmul.mubr.f32.gmra.mrb[0].mxu0 %v191
    %v956 = vpop.f32.mrb[0].mxu0
    %v957 = vadd.f32 %v812, %v956
    %v958 = vpop.f32.mrb[0].mxu0
    %959 = vmatprep.mubr.f32.mxu0 %v208
    %960 = vmatmul.mubr.f32.gmra.mrb[0].mxu0 %v207
    %v961 = vpop.f32.mrb[0].mxu0
    %v962 = vadd.f32 %v817, %v961
    %v963 = vpop.f32.mrb[0].mxu0
    %964 = vmatprep.mubr.f32.mxu0 %v224
    %965 = vmatmul.mubr.f32.gmra.mrb[0].mxu0 %v223
    %v966 = vpop.f32.mrb[0].mxu0
    %v967 = vadd.f32 %v822, %v966
    %v968 = vpop.f32.mrb[0].mxu0
    %969 = vmatprep.mubr.f32.mxu0 %v240
    %970 = vmatmul.mubr.f32.gmra.mrb[0].mxu0 %v239
    %v971 = vpop.f32.mrb[0].mxu0
    %v972 = vadd.f32 %v827, %v971
    %v973 = vpop.f32.mrb[0].mxu0
    %974 = vmatprep.mubr.f32.mxu0 %v256
    %975 = vmatmul.mubr.f32.gmra.mrb[0].mxu0 %v255
    %v976 = vpop.f32.mrb[0].mxu0
    %v977 = vadd.f32 %v832, %v976
    %v978 = vpop.f32.mrb[0].mxu0
    %979 = vmatprep.mubr.f32.mxu0 %v272
    %980 = vmatmul.mubr.f32.gmra.mrb[0].mxu0 %v271
    %v981 = vpop.f32.mrb[0].mxu0
    %v982 = vadd.f32 %v837, %v981
    %v983 = vpop.f32.mrb[0].mxu0
    %984 = vmatprep.mubr.f32.mxu0 %v288
    %985 = vmatmul.mubr.f32.gmra.mrb[0].mxu0 %v287
    %v986 = vpop.f32.mrb[0].mxu0
    %v987 = vadd.f32 %v842, %v986
    %v988 = vpop.f32.mrb[0].mxu0
    %989 = vdwg.mxu0
    %990 = vmatprep.subr.mxu0 0.0
    %991 = vmatpush1.msra.mxu0 %v395
    %992 = vmatprep.subr.mxu0 0.0
    %993 = vmatpush1.msra.mxu0 %v396
    %994 = vmatprep.subr.mxu0 0.0
    %995 = vmatpush1.msra.mxu0 %v397
    %996 = vmatprep.subr.mxu0 0.0
    %997 = vmatpush1.msra.mxu0 %v398
    %998 = vmatprep.subr.mxu0 0.0
    %999 = vmatpush1.msra.mxu0 %v399
    %1000 = vmatprep.subr.mxu0 0.0
    %1001 = vmatpush1.msra.mxu0 %v400
    %1002 = vmatprep.subr.mxu0 0.0
    %1003 = vmatpush1.msra.mxu0 %v401
    %1004 = vmatprep.subr.mxu0 0.0
    %1005 = vmatpush1.msra.mxu0 %v402
    %1006 = vmatprep.subr.mxu0 0.0
    %1007 = vmatpush1.msra.mxu0 %v403
    %1008 = vmatprep.subr.mxu0 0.0
    %1009 = vmatpush1.msra.mxu0 %v404
    %1010 = vmatprep.subr.mxu0 0.0
    %1011 = vmatpush1.msra.mxu0 %v405
    %1012 = vmatprep.subr.mxu0 0.0
    %1013 = vmatpush1.msra.mxu0 %v406
    %1014 = vmatprep.subr.mxu0 0.0
    %1015 = vmatpush1.msra.mxu0 %v407
    %1016 = vmatprep.subr.mxu0 0.0
    %1017 = vmatpush1.msra.mxu0 %v408
    %1018 = vmatprep.subr.mxu0 0.0
    %1019 = vmatpush1.msra.mxu0 %v409
    %1020 = vmatprep.subr.mxu0 0.0
    %1021 = vmatpush1.msra.mxu0 %v410
    %1022 = vmatprep.subr.mxu0 0.0
    %1023 = vmatpush1.msra.mxu0 %v411
    %1024 = vmatprep.subr.mxu0 0.0
    %1025 = vmatpush1.msra.mxu0 %v412
    %1026 = vmatprep.subr.mxu0 0.0
    %1027 = vmatpush1.msra.mxu0 %v413
    %1028 = vmatprep.subr.mxu0 0.0
    %1029 = vmatpush1.msra.mxu0 %v414
    %1030 = vmatprep.subr.mxu0 0.0
    %1031 = vmatpush1.msra.mxu0 %v415
    %1032 = vmatprep.subr.mxu0 0.0
    %1033 = vmatpush1.msra.mxu0 %v416
    %1034 = vmatprep.subr.mxu0 0.0
    %1035 = vmatpush1.msra.mxu0 %v417
    %1036 = vmatprep.subr.mxu0 0.0
    %1037 = vmatpush1.msra.mxu0 %v418
    %1038 = vmatprep.subr.mxu0 0.0
    %1039 = vmatpush1.msra.mxu0 %v419
    %1040 = vmatprep.subr.mxu0 0.0
    %1041 = vmatpush1.msra.mxu0 %v420
    %1042 = vmatprep.subr.mxu0 0.0
    %1043 = vmatpush1.msra.mxu0 %v421
    %1044 = vmatprep.subr.mxu0 0.0
    %1045 = vmatpush1.msra.mxu0 %v422
    %1046 = vmatprep.subr.mxu0 0.0
    %1047 = vmatpush1.msra.mxu0 %v423
    %1048 = vmatprep.subr.mxu0 0.0
    %1049 = vmatpush1.msra.mxu0 %v424
    %1050 = vmatprep.subr.mxu0 0.0
    %1051 = vmatpush1.msra.mxu0 %v425
    %1052 = vmatprep.subr.mxu0 0.0
    %1053 = vmatpush1.msra.mxu0 %v426
    %1054 = vmatprep.mubr.f32.mxu0 %v50
    %1055 = vmatmul.mubr.f32.gmra.mrb[0].mxu0 %v49
    %v1056 = vpop.f32.mrb[0].mxu0
    %v1057 = vadd.f32 %v912, %v1056
    %v1058 = vpop.f32.mrb[0].mxu0
    %1059 = vmatprep.mubr.f32.mxu0 %v66
    %1060 = vmatmul.mubr.f32.gmra.mrb[0].mxu0 %v65
    %v1061 = vpop.f32.mrb[0].mxu0
    %v1062 = vadd.f32 %v917, %v1061
    %v1063 = vpop.f32.mrb[0].mxu0
    %1064 = vmatprep.mubr.f32.mxu0 %v82
    %1065 = vmatmul.mubr.f32.gmra.mrb[0].mxu0 %v81
    %v1066 = vpop.f32.mrb[0].mxu0
    %v1067 = vadd.f32 %v922, %v1066
    %v1068 = vpop.f32.mrb[0].mxu0
    %1069 = vmatprep.mubr.f32.mxu0 %v98
    %1070 = vmatmul.mubr.f32.gmra.mrb[0].mxu0 %v97
    %v1071 = vpop.f32.mrb[0].mxu0
    %v1072 = vadd.f32 %v927, %v1071
    %v1073 = vpop.f32.mrb[0].mxu0
    %1074 = vmatprep.mubr.f32.mxu0 %v114
    %1075 = vmatmul.mubr.f32.gmra.mrb[0].mxu0 %v113
    %v1076 = vpop.f32.mrb[0].mxu0
    %v1077 = vadd.f32 %v932, %v1076
    %v1078 = vpop.f32.mrb[0].mxu0
    %1079 = vmatprep.mubr.f32.mxu0 %v130
    %1080 = vmatmul.mubr.f32.gmra.mrb[0].mxu0 %v129
    %v1081 = vpop.f32.mrb[0].mxu0
    %v1082 = vadd.f32 %v937, %v1081
    %v1083 = vpop.f32.mrb[0].mxu0
    %1084 = vmatprep.mubr.f32.mxu0 %v146
    %1085 = vmatmul.mubr.f32.gmra.mrb[0].mxu0 %v145
    %v1086 = vpop.f32.mrb[0].mxu0
    %v1087 = vadd.f32 %v942, %v1086
    %v1088 = vpop.f32.mrb[0].mxu0
    %1089 = vmatprep.mubr.f32.mxu0 %v162
    %1090 = vmatmul.mubr.f32.gmra.mrb[0].mxu0 %v161
    %v1091 = vpop.f32.mrb[0].mxu0
    %v1092 = vadd.f32 %v947, %v1091
    %v1093 = vpop.f32.mrb[0].mxu0
    %1094 = vmatprep.mubr.f32.mxu0 %v178
    %1095 = vmatmul.mubr.f32.gmra.mrb[0].mxu0 %v177
    %v1096 = vpop.f32.mrb[0].mxu0
    %v1097 = vadd.f32 %v952, %v1096
    %v1098 = vpop.f32.mrb[0].mxu0
    %1099 = vmatprep.mubr.f32.mxu0 %v194
    %1100 = vmatmul.mubr.f32.gmra.mrb[0].mxu0 %v193
    %v1101 = vpop.f32.mrb[0].mxu0
    %v1102 = vadd.f32 %v957, %v1101
    %v1103 = vpop.f32.mrb[0].mxu0
    %1104 = vmatprep.mubr.f32.mxu0 %v210
    %1105 = vmatmul.mubr.f32.gmra.mrb[0].mxu0 %v209
    %v1106 = vpop.f32.mrb[0].mxu0
    %v1107 = vadd.f32 %v962, %v1106
    %v1108 = vpop.f32.mrb[0].mxu0
    %1109 = vmatprep.mubr.f32.mxu0 %v226
    %1110 = vmatmul.mubr.f32.gmra.mrb[0].mxu0 %v225
    %v1111 = vpop.f32.mrb[0].mxu0
    %v1112 = vadd.f32 %v967, %v1111
    %v1113 = vpop.f32.mrb[0].mxu0
    %1114 = vmatprep.mubr.f32.mxu0 %v242
    %1115 = vmatmul.mubr.f32.gmra.mrb[0].mxu0 %v241
    %v1116 = vpop.f32.mrb[0].mxu0
    %v1117 = vadd.f32 %v972, %v1116
    %v1118 = vpop.f32.mrb[0].mxu0
    %1119 = vmatprep.mubr.f32.mxu0 %v258
    %1120 = vmatmul.mubr.f32.gmra.mrb[0].mxu0 %v257
    %v1121 = vpop.f32.mrb[0].mxu0
    %v1122 = vadd.f32 %v977, %v1121
    %v1123 = vpop.f32.mrb[0].mxu0
    %1124 = vmatprep.mubr.f32.mxu0 %v274
    %1125 = vmatmul.mubr.f32.gmra.mrb[0].mxu0 %v273
    %v1126 = vpop.f32.mrb[0].mxu0
    %v1127 = vadd.f32 %v982, %v1126
    %v1128 = vpop.f32.mrb[0].mxu0
    %1129 = vmatprep.mubr.f32.mxu0 %v290
    %1130 = vmatmul.mubr.f32.gmra.mrb[0].mxu0 %v289
    %v1131 = vpop.f32.mrb[0].mxu0
    %v1132 = vadd.f32 %v987, %v1131
    %v1133 = vpop.f32.mrb[0].mxu0
    %1134 = vdwg.mxu0
    %1135 = vmatprep.subr.mxu0 0.0
    %1136 = vmatpush1.msra.mxu0 %v427
    %1137 = vmatprep.subr.mxu0 0.0
    %1138 = vmatpush1.msra.mxu0 %v428
    %1139 = vmatprep.subr.mxu0 0.0
    %1140 = vmatpush1.msra.mxu0 %v429
    %1141 = vmatprep.subr.mxu0 0.0
    %1142 = vmatpush1.msra.mxu0 %v430
    %1143 = vmatprep.subr.mxu0 0.0
    %1144 = vmatpush1.msra.mxu0 %v431
    %1145 = vmatprep.subr.mxu0 0.0
    %1146 = vmatpush1.msra.mxu0 %v432
    %1147 = vmatprep.subr.mxu0 0.0
    %1148 = vmatpush1.msra.mxu0 %v433
    %1149 = vmatprep.subr.mxu0 0.0
    %1150 = vmatpush1.msra.mxu0 %v434
    %1151 = vmatprep.subr.mxu0 0.0
    %1152 = vmatpush1.msra.mxu0 %v435
    %1153 = vmatprep.subr.mxu0 0.0
    %1154 = vmatpush1.msra.mxu0 %v436
    %1155 = vmatprep.subr.mxu0 0.0
    %1156 = vmatpush1.msra.mxu0 %v437
    %1157 = vmatprep.subr.mxu0 0.0
    %1158 = vmatpush1.msra.mxu0 %v438
    %1159 = vmatprep.subr.mxu0 0.0
    %1160 = vmatpush1.msra.mxu0 %v439
    %1161 = vmatprep.subr.mxu0 0.0
    %1162 = vmatpush1.msra.mxu0 %v440
    %1163 = vmatprep.subr.mxu0 0.0
    %1164 = vmatpush1.msra.mxu0 %v441
    %1165 = vmatprep.subr.mxu0 0.0
    %1166 = vmatpush1.msra.mxu0 %v442
    %1167 = vmatprep.subr.mxu0 0.0
    %1168 = vmatpush1.msra.mxu0 %v443
    %1169 = vmatprep.subr.mxu0 0.0
    %1170 = vmatpush1.msra.mxu0 %v444
    %1171 = vmatprep.subr.mxu0 0.0
    %1172 = vmatpush1.msra.mxu0 %v445
    %1173 = vmatprep.subr.mxu0 0.0
    %1174 = vmatpush1.msra.mxu0 %v446
    %1175 = vmatprep.subr.mxu0 0.0
    %1176 = vmatpush1.msra.mxu0 %v447
    %1177 = vmatprep.subr.mxu0 0.0
    %1178 = vmatpush1.msra.mxu0 %v448
    %1179 = vmatprep.subr.mxu0 0.0
    %1180 = vmatpush1.msra.mxu0 %v449
    %1181 = vmatprep.subr.mxu0 0.0
    %1182 = vmatpush1.msra.mxu0 %v450
    %1183 = vmatprep.subr.mxu0 0.0
    %1184 = vmatpush1.msra.mxu0 %v451
    %1185 = vmatprep.subr.mxu0 0.0
    %1186 = vmatpush1.msra.mxu0 %v452
    %1187 = vmatprep.subr.mxu0 0.0
    %1188 = vmatpush1.msra.mxu0 %v453
    %1189 = vmatprep.subr.mxu0 0.0
    %1190 = vmatpush1.msra.mxu0 %v454
    %1191 = vmatprep.subr.mxu0 0.0
    %1192 = vmatpush1.msra.mxu0 %v455
    %1193 = vmatprep.subr.mxu0 0.0
    %1194 = vmatpush1.msra.mxu0 %v456
    %1195 = vmatprep.subr.mxu0 0.0
    %1196 = vmatpush1.msra.mxu0 %v457
    %1197 = vmatprep.subr.mxu0 0.0
    %1198 = vmatpush1.msra.mxu0 %v458
    %1199 = vmatprep.mubr.f32.mxu0 %v52
    %1200 = vmatmul.mubr.f32.gmra.mrb[0].mxu0 %v51
    %v1201 = vpop.f32.mrb[0].mxu0
    %v1202 = vadd.f32 %v1057, %v1201
    %v1203 = vpop.f32.mrb[0].mxu0
    %1204 = vmatprep.mubr.f32.mxu0 %v68
    %1205 = vmatmul.mubr.f32.gmra.mrb[0].mxu0 %v67
    %v1206 = vpop.f32.mrb[0].mxu0
    %v1207 = vadd.f32 %v1062, %v1206
    %v1208 = vpop.f32.mrb[0].mxu0
    %1209 = vmatprep.mubr.f32.mxu0 %v84
    %1210 = vmatmul.mubr.f32.gmra.mrb[0].mxu0 %v83
    %v1211 = vpop.f32.mrb[0].mxu0
    %v1212 = vadd.f32 %v1067, %v1211
    %v1213 = vpop.f32.mrb[0].mxu0
    %1214 = vmatprep.mubr.f32.mxu0 %v100
    %1215 = vmatmul.mubr.f32.gmra.mrb[0].mxu0 %v99
    %v1216 = vpop.f32.mrb[0].mxu0
    %v1217 = vadd.f32 %v1072, %v1216
    %v1218 = vpop.f32.mrb[0].mxu0
    %1219 = vmatprep.mubr.f32.mxu0 %v116
    %1220 = vmatmul.mubr.f32.gmra.mrb[0].mxu0 %v115
    %v1221 = vpop.f32.mrb[0].mxu0
    %v1222 = vadd.f32 %v1077, %v1221
    %v1223 = vpop.f32.mrb[0].mxu0
    %1224 = vmatprep.mubr.f32.mxu0 %v132
    %1225 = vmatmul.mubr.f32.gmra.mrb[0].mxu0 %v131
    %v1226 = vpop.f32.mrb[0].mxu0
    %v1227 = vadd.f32 %v1082, %v1226
    %v1228 = vpop.f32.mrb[0].mxu0
    %1229 = vmatprep.mubr.f32.mxu0 %v148
    %1230 = vmatmul.mubr.f32.gmra.mrb[0].mxu0 %v147
    %v1231 = vpop.f32.mrb[0].mxu0
    %v1232 = vadd.f32 %v1087, %v1231
    %v1233 = vpop.f32.mrb[0].mxu0
    %1234 = vmatprep.mubr.f32.mxu0 %v164
    %1235 = vmatmul.mubr.f32.gmra.mrb[0].mxu0 %v163
    %v1236 = vpop.f32.mrb[0].mxu0
    %v1237 = vadd.f32 %v1092, %v1236
    %v1238 = vpop.f32.mrb[0].mxu0
    %1239 = vmatprep.mubr.f32.mxu0 %v180
    %1240 = vmatmul.mubr.f32.gmra.mrb[0].mxu0 %v179
    %v1241 = vpop.f32.mrb[0].mxu0
    %v1242 = vadd.f32 %v1097, %v1241
    %v1243 = vpop.f32.mrb[0].mxu0
    %1244 = vmatprep.mubr.f32.mxu0 %v196
    %1245 = vmatmul.mubr.f32.gmra.mrb[0].mxu0 %v195
    %v1246 = vpop.f32.mrb[0].mxu0
    %v1247 = vadd.f32 %v1102, %v1246
    %v1248 = vpop.f32.mrb[0].mxu0
    %1249 = vmatprep.mubr.f32.mxu0 %v212
    %1250 = vmatmul.mubr.f32.gmra.mrb[0].mxu0 %v211
    %v1251 = vpop.f32.mrb[0].mxu0
    %v1252 = vadd.f32 %v1107, %v1251
    %v1253 = vpop.f32.mrb[0].mxu0
    %1254 = vmatprep.mubr.f32.mxu0 %v228
    %1255 = vmatmul.mubr.f32.gmra.mrb[0].mxu0 %v227
    %v1256 = vpop.f32.mrb[0].mxu0
    %v1257 = vadd.f32 %v1112, %v1256
    %v1258 = vpop.f32.mrb[0].mxu0
    %1259 = vmatprep.mubr.f32.mxu0 %v244
    %1260 = vmatmul.mubr.f32.gmra.mrb[0].mxu0 %v243
    %v1261 = vpop.f32.mrb[0].mxu0
    %v1262 = vadd.f32 %v1117, %v1261
    %v1263 = vpop.f32.mrb[0].mxu0
    %1264 = vmatprep.mubr.f32.mxu0 %v260
    %1265 = vmatmul.mubr.f32.gmra.mrb[0].mxu0 %v259
    %v1266 = vpop.f32.mrb[0].mxu0
    %v1267 = vadd.f32 %v1122, %v1266
    %v1268 = vpop.f32.mrb[0].mxu0
    %1269 = vmatprep.mubr.f32.mxu0 %v276
    %1270 = vmatmul.mubr.f32.gmra.mrb[0].mxu0 %v275
    %v1271 = vpop.f32.mrb[0].mxu0
    %v1272 = vadd.f32 %v1127, %v1271
    %v1273 = vpop.f32.mrb[0].mxu0
    %1274 = vmatprep.mubr.f32.mxu0 %v292
    %1275 = vmatmul.mubr.f32.gmra.mrb[0].mxu0 %v291
    %v1276 = vpop.f32.mrb[0].mxu0
    %v1277 = vadd.f32 %v1132, %v1276
    %v1278 = vpop.f32.mrb[0].mxu0
    %1279 = vdwg.mxu0
    %1280 = vmatprep.subr.mxu0 0.0
    %1281 = vmatpush1.msra.mxu0 %v459
    %1282 = vmatprep.subr.mxu0 0.0
    %1283 = vmatpush1.msra.mxu0 %v460
    %1284 = vmatprep.subr.mxu0 0.0
    %1285 = vmatpush1.msra.mxu0 %v461
    %1286 = vmatprep.subr.mxu0 0.0
    %1287 = vmatpush1.msra.mxu0 %v462
    %1288 = vmatprep.subr.mxu0 0.0
    %1289 = vmatpush1.msra.mxu0 %v463
    %1290 = vmatprep.subr.mxu0 0.0
    %1291 = vmatpush1.msra.mxu0 %v464
    %1292 = vmatprep.subr.mxu0 0.0
    %1293 = vmatpush1.msra.mxu0 %v465
    %1294 = vmatprep.subr.mxu0 0.0
    %1295 = vmatpush1.msra.mxu0 %v466
    %1296 = vmatprep.subr.mxu0 0.0
    %1297 = vmatpush1.msra.mxu0 %v467
    %1298 = vmatprep.subr.mxu0 0.0
    %1299 = vmatpush1.msra.mxu0 %v468
    %1300 = vmatprep.subr.mxu0 0.0
    %1301 = vmatpush1.msra.mxu0 %v469
    %1302 = vmatprep.subr.mxu0 0.0
    %1303 = vmatpush1.msra.mxu0 %v470
    %1304 = vmatprep.subr.mxu0 0.0
    %1305 = vmatpush1.msra.mxu0 %v471
    %1306 = vmatprep.subr.mxu0 0.0
    %1307 = vmatpush1.msra.mxu0 %v472
    %1308 = vmatprep.subr.mxu0 0.0
    %1309 = vmatpush1.msra.mxu0 %v473
    %1310 = vmatprep.subr.mxu0 0.0
    %1311 = vmatpush1.msra.mxu0 %v474
    %1312 = vmatprep.subr.mxu0 0.0
    %1313 = vmatpush1.msra.mxu0 %v475
    %1314 = vmatprep.subr.mxu0 0.0
    %1315 = vmatpush1.msra.mxu0 %v476
    %1316 = vmatprep.subr.mxu0 0.0
    %1317 = vmatpush1.msra.mxu0 %v477
    %1318 = vmatprep.subr.mxu0 0.0
    %1319 = vmatpush1.msra.mxu0 %v478
    %1320 = vmatprep.subr.mxu0 0.0
    %1321 = vmatpush1.msra.mxu0 %v479
    %1322 = vmatprep.subr.mxu0 0.0
    %1323 = vmatpush1.msra.mxu0 %v480
    %1324 = vmatprep.subr.mxu0 0.0
    %1325 = vmatpush1.msra.mxu0 %v481
    %1326 = vmatprep.subr.mxu0 0.0
    %1327 = vmatpush1.msra.mxu0 %v482
    %1328 = vmatprep.subr.mxu0 0.0
    %1329 = vmatpush1.msra.mxu0 %v483
    %1330 = vmatprep.subr.mxu0 0.0
    %1331 = vmatpush1.msra.mxu0 %v484
    %1332 = vmatprep.subr.mxu0 0.0
    %1333 = vmatpush1.msra.mxu0 %v485
    %1334 = vmatprep.subr.mxu0 0.0
    %1335 = vmatpush1.msra.mxu0 %v486
    %1336 = vmatprep.subr.mxu0 0.0
    %1337 = vmatpush1.msra.mxu0 %v487
    %1338 = vmatprep.subr.mxu0 0.0
    %1339 = vmatpush1.msra.mxu0 %v488
    %1340 = vmatprep.subr.mxu0 0.0
    %1341 = vmatpush1.msra.mxu0 %v489
    %1342 = vmatprep.subr.mxu0 0.0
    %1343 = vmatpush1.msra.mxu0 %v490
    %1344 = vmatprep.mubr.f32.mxu0 %v54
    %1345 = vmatmul.mubr.f32.gmra.mrb[0].mxu0 %v53
    %v1346 = vpop.f32.mrb[0].mxu0
    %v1347 = vadd.f32 %v1202, %v1346
    %v1348 = vpop.f32.mrb[0].mxu0
    %1349 = vmatprep.mubr.f32.mxu0 %v70
    %1350 = vmatmul.mubr.f32.gmra.mrb[0].mxu0 %v69
    %v1351 = vpop.f32.mrb[0].mxu0
    %v1352 = vadd.f32 %v1207, %v1351
    %v1353 = vpop.f32.mrb[0].mxu0
    %1354 = vmatprep.mubr.f32.mxu0 %v86
    %1355 = vmatmul.mubr.f32.gmra.mrb[0].mxu0 %v85
    %v1356 = vpop.f32.mrb[0].mxu0
    %v1357 = vadd.f32 %v1212, %v1356
    %v1358 = vpop.f32.mrb[0].mxu0
    %1359 = vmatprep.mubr.f32.mxu0 %v102
    %1360 = vmatmul.mubr.f32.gmra.mrb[0].mxu0 %v101
    %v1361 = vpop.f32.mrb[0].mxu0
    %v1362 = vadd.f32 %v1217, %v1361
    %v1363 = vpop.f32.mrb[0].mxu0
    %1364 = vmatprep.mubr.f32.mxu0 %v118
    %1365 = vmatmul.mubr.f32.gmra.mrb[0].mxu0 %v117
    %v1366 = vpop.f32.mrb[0].mxu0
    %v1367 = vadd.f32 %v1222, %v1366
    %v1368 = vpop.f32.mrb[0].mxu0
    %1369 = vmatprep.mubr.f32.mxu0 %v134
    %1370 = vmatmul.mubr.f32.gmra.mrb[0].mxu0 %v133
    %v1371 = vpop.f32.mrb[0].mxu0
    %v1372 = vadd.f32 %v1227, %v1371
    %v1373 = vpop.f32.mrb[0].mxu0
    %1374 = vmatprep.mubr.f32.mxu0 %v150
    %1375 = vmatmul.mubr.f32.gmra.mrb[0].mxu0 %v149
    %v1376 = vpop.f32.mrb[0].mxu0
    %v1377 = vadd.f32 %v1232, %v1376
    %v1378 = vpop.f32.mrb[0].mxu0
    %1379 = vmatprep.mubr.f32.mxu0 %v166
    %1380 = vmatmul.mubr.f32.gmra.mrb[0].mxu0 %v165
    %v1381 = vpop.f32.mrb[0].mxu0
    %v1382 = vadd.f32 %v1237, %v1381
    %v1383 = vpop.f32.mrb[0].mxu0
    %1384 = vmatprep.mubr.f32.mxu0 %v182
    %1385 = vmatmul.mubr.f32.gmra.mrb[0].mxu0 %v181
    %v1386 = vpop.f32.mrb[0].mxu0
    %v1387 = vadd.f32 %v1242, %v1386
    %v1388 = vpop.f32.mrb[0].mxu0
    %1389 = vmatprep.mubr.f32.mxu0 %v198
    %1390 = vmatmul.mubr.f32.gmra.mrb[0].mxu0 %v197
    %v1391 = vpop.f32.mrb[0].mxu0
    %v1392 = vadd.f32 %v1247, %v1391
    %v1393 = vpop.f32.mrb[0].mxu0
    %1394 = vmatprep.mubr.f32.mxu0 %v214
    %1395 = vmatmul.mubr.f32.gmra.mrb[0].mxu0 %v213
    %v1396 = vpop.f32.mrb[0].mxu0
    %v1397 = vadd.f32 %v1252, %v1396
    %v1398 = vpop.f32.mrb[0].mxu0
    %1399 = vmatprep.mubr.f32.mxu0 %v230
    %1400 = vmatmul.mubr.f32.gmra.mrb[0].mxu0 %v229
    %v1401 = vpop.f32.mrb[0].mxu0
    %v1402 = vadd.f32 %v1257, %v1401
    %v1403 = vpop.f32.mrb[0].mxu0
    %1404 = vmatprep.mubr.f32.mxu0 %v246
    %1405 = vmatmul.mubr.f32.gmra.mrb[0].mxu0 %v245
    %v1406 = vpop.f32.mrb[0].mxu0
    %v1407 = vadd.f32 %v1262, %v1406
    %v1408 = vpop.f32.mrb[0].mxu0
    %1409 = vmatprep.mubr.f32.mxu0 %v262
    %1410 = vmatmul.mubr.f32.gmra.mrb[0].mxu0 %v261
    %v1411 = vpop.f32.mrb[0].mxu0
    %v1412 = vadd.f32 %v1267, %v1411
    %v1413 = vpop.f32.mrb[0].mxu0
    %1414 = vmatprep.mubr.f32.mxu0 %v278
    %1415 = vmatmul.mubr.f32.gmra.mrb[0].mxu0 %v277
    %v1416 = vpop.f32.mrb[0].mxu0
    %v1417 = vadd.f32 %v1272, %v1416
    %v1418 = vpop.f32.mrb[0].mxu0
    %1419 = vmatprep.mubr.f32.mxu0 %v294
    %1420 = vmatmul.mubr.f32.gmra.mrb[0].mxu0 %v293
    %v1421 = vpop.f32.mrb[0].mxu0
    %v1422 = vadd.f32 %v1277, %v1421
    %v1423 = vpop.f32.mrb[0].mxu0
    %1424 = vdwg.mxu0
    %1425 = vmatprep.subr.mxu0 0.0
    %1426 = vmatpush1.msra.mxu0 %v491
    %1427 = vmatprep.subr.mxu0 0.0
    %1428 = vmatpush1.msra.mxu0 %v492
    %1429 = vmatprep.subr.mxu0 0.0
    %1430 = vmatpush1.msra.mxu0 %v493
    %1431 = vmatprep.subr.mxu0 0.0
    %1432 = vmatpush1.msra.mxu0 %v494
    %1433 = vmatprep.subr.mxu0 0.0
    %1434 = vmatpush1.msra.mxu0 %v495
    %1435 = vmatprep.subr.mxu0 0.0
    %1436 = vmatpush1.msra.mxu0 %v496
    %1437 = vmatprep.subr.mxu0 0.0
    %1438 = vmatpush1.msra.mxu0 %v497
    %1439 = vmatprep.subr.mxu0 0.0
    %1440 = vmatpush1.msra.mxu0 %v498
    %1441 = vmatprep.subr.mxu0 0.0
    %1442 = vmatpush1.msra.mxu0 %v499
    %1443 = vmatprep.subr.mxu0 0.0
    %1444 = vmatpush1.msra.mxu0 %v500
    %1445 = vmatprep.subr.mxu0 0.0
    %1446 = vmatpush1.msra.mxu0 %v501
    %1447 = vmatprep.subr.mxu0 0.0
    %1448 = vmatpush1.msra.mxu0 %v502
    %1449 = vmatprep.subr.mxu0 0.0
    %1450 = vmatpush1.msra.mxu0 %v503
    %1451 = vmatprep.subr.mxu0 0.0
    %1452 = vmatpush1.msra.mxu0 %v504
    %1453 = vmatprep.subr.mxu0 0.0
    %1454 = vmatpush1.msra.mxu0 %v505
    %1455 = vmatprep.subr.mxu0 0.0
    %1456 = vmatpush1.msra.mxu0 %v506
    %1457 = vmatprep.subr.mxu0 0.0
    %1458 = vmatpush1.msra.mxu0 %v507
    %1459 = vmatprep.subr.mxu0 0.0
    %1460 = vmatpush1.msra.mxu0 %v508
    %1461 = vmatprep.subr.mxu0 0.0
    %1462 = vmatpush1.msra.mxu0 %v509
    %1463 = vmatprep.subr.mxu0 0.0
    %1464 = vmatpush1.msra.mxu0 %v510
    %1465 = vmatprep.subr.mxu0 0.0
    %1466 = vmatpush1.msra.mxu0 %v511
    %1467 = vmatprep.subr.mxu0 0.0
    %1468 = vmatpush1.msra.mxu0 %v512
    %1469 = vmatprep.subr.mxu0 0.0
    %1470 = vmatpush1.msra.mxu0 %v513
    %1471 = vmatprep.subr.mxu0 0.0
    %1472 = vmatpush1.msra.mxu0 %v514
    %1473 = vmatprep.subr.mxu0 0.0
    %1474 = vmatpush1.msra.mxu0 %v515
    %1475 = vmatprep.subr.mxu0 0.0
    %1476 = vmatpush1.msra.mxu0 %v516
    %1477 = vmatprep.subr.mxu0 0.0
    %1478 = vmatpush1.msra.mxu0 %v517
    %1479 = vmatprep.subr.mxu0 0.0
    %1480 = vmatpush1.msra.mxu0 %v518
    %1481 = vmatprep.subr.mxu0 0.0
    %1482 = vmatpush1.msra.mxu0 %v519
    %1483 = vmatprep.subr.mxu0 0.0
    %1484 = vmatpush1.msra.mxu0 %v520
    %1485 = vmatprep.subr.mxu0 0.0
    %1486 = vmatpush1.msra.mxu0 %v521
    %1487 = vmatprep.subr.mxu0 0.0
    %1488 = vmatpush1.msra.mxu0 %v522
    %1489 = vmatprep.mubr.f32.mxu0 %v56
    %1490 = vmatmul.mubr.f32.gmra.mrb[0].mxu0 %v55
    %v1491 = vpop.f32.mrb[0].mxu0
    %v1492 = vadd.f32 %v1347, %v1491
    %v1493 = vpop.f32.mrb[0].mxu0
    %1494 = vmatprep.mubr.f32.mxu0 %v72
    %1495 = vmatmul.mubr.f32.gmra.mrb[0].mxu0 %v71
    %v1496 = vpop.f32.mrb[0].mxu0
    %v1497 = vadd.f32 %v1352, %v1496
    %v1498 = vpop.f32.mrb[0].mxu0
    %1499 = vmatprep.mubr.f32.mxu0 %v88
    %1500 = vmatmul.mubr.f32.gmra.mrb[0].mxu0 %v87
    %v1501 = vpop.f32.mrb[0].mxu0
    %v1502 = vadd.f32 %v1357, %v1501
    %v1503 = vpop.f32.mrb[0].mxu0
    %1504 = vmatprep.mubr.f32.mxu0 %v104
    %1505 = vmatmul.mubr.f32.gmra.mrb[0].mxu0 %v103
    %v1506 = vpop.f32.mrb[0].mxu0
    %v1507 = vadd.f32 %v1362, %v1506
    %v1508 = vpop.f32.mrb[0].mxu0
    %1509 = vmatprep.mubr.f32.mxu0 %v120
    %1510 = vmatmul.mubr.f32.gmra.mrb[0].mxu0 %v119
    %v1511 = vpop.f32.mrb[0].mxu0
    %v1512 = vadd.f32 %v1367, %v1511
    %v1513 = vpop.f32.mrb[0].mxu0
    %1514 = vmatprep.mubr.f32.mxu0 %v136
    %1515 = vmatmul.mubr.f32.gmra.mrb[0].mxu0 %v135
    %v1516 = vpop.f32.mrb[0].mxu0
    %v1517 = vadd.f32 %v1372, %v1516
    %v1518 = vpop.f32.mrb[0].mxu0
    %1519 = vmatprep.mubr.f32.mxu0 %v152
    %1520 = vmatmul.mubr.f32.gmra.mrb[0].mxu0 %v151
    %v1521 = vpop.f32.mrb[0].mxu0
    %v1522 = vadd.f32 %v1377, %v1521
    %v1523 = vpop.f32.mrb[0].mxu0
    %1524 = vmatprep.mubr.f32.mxu0 %v168
    %1525 = vmatmul.mubr.f32.gmra.mrb[0].mxu0 %v167
    %v1526 = vpop.f32.mrb[0].mxu0
    %v1527 = vadd.f32 %v1382, %v1526
    %v1528 = vpop.f32.mrb[0].mxu0
    %1529 = vmatprep.mubr.f32.mxu0 %v184
    %1530 = vmatmul.mubr.f32.gmra.mrb[0].mxu0 %v183
    %v1531 = vpop.f32.mrb[0].mxu0
    %v1532 = vadd.f32 %v1387, %v1531
    %v1533 = vpop.f32.mrb[0].mxu0
    %1534 = vmatprep.mubr.f32.mxu0 %v200
    %1535 = vmatmul.mubr.f32.gmra.mrb[0].mxu0 %v199
    %v1536 = vpop.f32.mrb[0].mxu0
    %v1537 = vadd.f32 %v1392, %v1536
    %v1538 = vpop.f32.mrb[0].mxu0
    %1539 = vmatprep.mubr.f32.mxu0 %v216
    %1540 = vmatmul.mubr.f32.gmra.mrb[0].mxu0 %v215
    %v1541 = vpop.f32.mrb[0].mxu0
    %v1542 = vadd.f32 %v1397, %v1541
    %v1543 = vpop.f32.mrb[0].mxu0
    %1544 = vmatprep.mubr.f32.mxu0 %v232
    %1545 = vmatmul.mubr.f32.gmra.mrb[0].mxu0 %v231
    %v1546 = vpop.f32.mrb[0].mxu0
    %v1547 = vadd.f32 %v1402, %v1546
    %v1548 = vpop.f32.mrb[0].mxu0
    %1549 = vmatprep.mubr.f32.mxu0 %v248
    %1550 = vmatmul.mubr.f32.gmra.mrb[0].mxu0 %v247
    %v1551 = vpop.f32.mrb[0].mxu0
    %v1552 = vadd.f32 %v1407, %v1551
    %v1553 = vpop.f32.mrb[0].mxu0
    %1554 = vmatprep.mubr.f32.mxu0 %v264
    %1555 = vmatmul.mubr.f32.gmra.mrb[0].mxu0 %v263
    %v1556 = vpop.f32.mrb[0].mxu0
    %v1557 = vadd.f32 %v1412, %v1556
    %v1558 = vpop.f32.mrb[0].mxu0
    %1559 = vmatprep.mubr.f32.mxu0 %v280
    %1560 = vmatmul.mubr.f32.gmra.mrb[0].mxu0 %v279
    %v1561 = vpop.f32.mrb[0].mxu0
    %v1562 = vadd.f32 %v1417, %v1561
    %v1563 = vpop.f32.mrb[0].mxu0
    %1564 = vmatprep.mubr.f32.mxu0 %v296
    %1565 = vmatmul.mubr.f32.gmra.mrb[0].mxu0 %v295
    %v1566 = vpop.f32.mrb[0].mxu0
    %v1567 = vadd.f32 %v1422, %v1566
    %v1568 = vpop.f32.mrb[0].mxu0
    %1569 = vdwg.mxu0
    %1570 = vmatprep.subr.mxu0 0.0
    %1571 = vmatpush1.msra.mxu0 %v523
    %1572 = vmatprep.subr.mxu0 0.0
    %1573 = vmatpush1.msra.mxu0 %v524
    %1574 = vmatprep.subr.mxu0 0.0
    %1575 = vmatpush1.msra.mxu0 %v525
    %1576 = vmatprep.subr.mxu0 0.0
    %1577 = vmatpush1.msra.mxu0 %v526
    %1578 = vmatprep.subr.mxu0 0.0
    %1579 = vmatpush1.msra.mxu0 %v527
    %1580 = vmatprep.subr.mxu0 0.0
    %1581 = vmatpush1.msra.mxu0 %v528
    %1582 = vmatprep.subr.mxu0 0.0
    %1583 = vmatpush1.msra.mxu0 %v529
    %1584 = vmatprep.subr.mxu0 0.0
    %1585 = vmatpush1.msra.mxu0 %v530
    %1586 = vmatprep.subr.mxu0 0.0
    %1587 = vmatpush1.msra.mxu0 %v531
    %1588 = vmatprep.subr.mxu0 0.0
    %1589 = vmatpush1.msra.mxu0 %v532
    %1590 = vmatprep.subr.mxu0 0.0
    %1591 = vmatpush1.msra.mxu0 %v533
    %1592 = vmatprep.subr.mxu0 0.0
    %1593 = vmatpush1.msra.mxu0 %v534
    %1594 = vmatprep.subr.mxu0 0.0
    %1595 = vmatpush1.msra.mxu0 %v535
    %1596 = vmatprep.subr.mxu0 0.0
    %1597 = vmatpush1.msra.mxu0 %v536
    %1598 = vmatprep.subr.mxu0 0.0
    %1599 = vmatpush1.msra.mxu0 %v537
    %1600 = vmatprep.subr.mxu0 0.0
    %1601 = vmatpush1.msra.mxu0 %v538
    %1602 = vmatprep.subr.mxu0 0.0
    %1603 = vmatpush1.msra.mxu0 %v539
    %1604 = vmatprep.subr.mxu0 0.0
    %1605 = vmatpush1.msra.mxu0 %v540
    %1606 = vmatprep.subr.mxu0 0.0
    %1607 = vmatpush1.msra.mxu0 %v541
    %1608 = vmatprep.subr.mxu0 0.0
    %1609 = vmatpush1.msra.mxu0 %v542
    %1610 = vmatprep.subr.mxu0 0.0
    %1611 = vmatpush1.msra.mxu0 %v543
    %1612 = vmatprep.subr.mxu0 0.0
    %1613 = vmatpush1.msra.mxu0 %v544
    %1614 = vmatprep.subr.mxu0 0.0
    %1615 = vmatpush1.msra.mxu0 %v545
    %1616 = vmatprep.subr.mxu0 0.0
    %1617 = vmatpush1.msra.mxu0 %v546
    %1618 = vmatprep.subr.mxu0 0.0
    %1619 = vmatpush1.msra.mxu0 %v547
    %1620 = vmatprep.subr.mxu0 0.0
    %1621 = vmatpush1.msra.mxu0 %v548
    %1622 = vmatprep.subr.mxu0 0.0
    %1623 = vmatpush1.msra.mxu0 %v549
    %1624 = vmatprep.subr.mxu0 0.0
    %1625 = vmatpush1.msra.mxu0 %v550
    %1626 = vmatprep.subr.mxu0 0.0
    %1627 = vmatpush1.msra.mxu0 %v551
    %1628 = vmatprep.subr.mxu0 0.0
    %1629 = vmatpush1.msra.mxu0 %v552
    %1630 = vmatprep.subr.mxu0 0.0
    %1631 = vmatpush1.msra.mxu0 %v553
    %1632 = vmatprep.subr.mxu0 0.0
    %1633 = vmatpush1.msra.mxu0 %v554
    %1634 = vmatprep.mubr.f32.mxu0 %v58
    %1635 = vmatmul.mubr.f32.gmra.mrb[0].mxu0 %v57
    %v1636 = vpop.f32.mrb[0].mxu0
    %v1637 = vadd.f32 %v1492, %v1636
    %v1638 = vpop.f32.mrb[0].mxu0
    %1639 = vmatprep.mubr.f32.mxu0 %v74
    %1640 = vmatmul.mubr.f32.gmra.mrb[0].mxu0 %v73
    %v1641 = vpop.f32.mrb[0].mxu0
    %v1642 = vadd.f32 %v1497, %v1641
    %v1643 = vpop.f32.mrb[0].mxu0
    %1644 = vmatprep.mubr.f32.mxu0 %v90
    %1645 = vmatmul.mubr.f32.gmra.mrb[0].mxu0 %v89
    %v1646 = vpop.f32.mrb[0].mxu0
    %v1647 = vadd.f32 %v1502, %v1646
    %v1648 = vpop.f32.mrb[0].mxu0
    %1649 = vmatprep.mubr.f32.mxu0 %v106
    %1650 = vmatmul.mubr.f32.gmra.mrb[0].mxu0 %v105
    %v1651 = vpop.f32.mrb[0].mxu0
    %v1652 = vadd.f32 %v1507, %v1651
    %v1653 = vpop.f32.mrb[0].mxu0
    %1654 = vmatprep.mubr.f32.mxu0 %v122
    %1655 = vmatmul.mubr.f32.gmra.mrb[0].mxu0 %v121
    %v1656 = vpop.f32.mrb[0].mxu0
    %v1657 = vadd.f32 %v1512, %v1656
    %v1658 = vpop.f32.mrb[0].mxu0
    %1659 = vmatprep.mubr.f32.mxu0 %v138
    %1660 = vmatmul.mubr.f32.gmra.mrb[0].mxu0 %v137
    %v1661 = vpop.f32.mrb[0].mxu0
    %v1662 = vadd.f32 %v1517, %v1661
    %v1663 = vpop.f32.mrb[0].mxu0
    %1664 = vmatprep.mubr.f32.mxu0 %v154
    %1665 = vmatmul.mubr.f32.gmra.mrb[0].mxu0 %v153
    %v1666 = vpop.f32.mrb[0].mxu0
    %v1667 = vadd.f32 %v1522, %v1666
    %v1668 = vpop.f32.mrb[0].mxu0
    %1669 = vmatprep.mubr.f32.mxu0 %v170
    %1670 = vmatmul.mubr.f32.gmra.mrb[0].mxu0 %v169
    %v1671 = vpop.f32.mrb[0].mxu0
    %v1672 = vadd.f32 %v1527, %v1671
    %v1673 = vpop.f32.mrb[0].mxu0
    %1674 = vmatprep.mubr.f32.mxu0 %v186
    %1675 = vmatmul.mubr.f32.gmra.mrb[0].mxu0 %v185
    %v1676 = vpop.f32.mrb[0].mxu0
    %v1677 = vadd.f32 %v1532, %v1676
    %v1678 = vpop.f32.mrb[0].mxu0
    %1679 = vmatprep.mubr.f32.mxu0 %v202
    %1680 = vmatmul.mubr.f32.gmra.mrb[0].mxu0 %v201
    %v1681 = vpop.f32.mrb[0].mxu0
    %v1682 = vadd.f32 %v1537, %v1681
    %v1683 = vpop.f32.mrb[0].mxu0
    %1684 = vmatprep.mubr.f32.mxu0 %v218
    %1685 = vmatmul.mubr.f32.gmra.mrb[0].mxu0 %v217
    %v1686 = vpop.f32.mrb[0].mxu0
    %v1687 = vadd.f32 %v1542, %v1686
    %v1688 = vpop.f32.mrb[0].mxu0
    %1689 = vmatprep.mubr.f32.mxu0 %v234
    %1690 = vmatmul.mubr.f32.gmra.mrb[0].mxu0 %v233
    %v1691 = vpop.f32.mrb[0].mxu0
    %v1692 = vadd.f32 %v1547, %v1691
    %v1693 = vpop.f32.mrb[0].mxu0
    %1694 = vmatprep.mubr.f32.mxu0 %v250
    %1695 = vmatmul.mubr.f32.gmra.mrb[0].mxu0 %v249
    %v1696 = vpop.f32.mrb[0].mxu0
    %v1697 = vadd.f32 %v1552, %v1696
    %v1698 = vpop.f32.mrb[0].mxu0
    %1699 = vmatprep.mubr.f32.mxu0 %v266
    %1700 = vmatmul.mubr.f32.gmra.mrb[0].mxu0 %v265
    %v1701 = vpop.f32.mrb[0].mxu0
    %v1702 = vadd.f32 %v1557, %v1701
    %v1703 = vpop.f32.mrb[0].mxu0
    %1704 = vmatprep.mubr.f32.mxu0 %v282
    %1705 = vmatmul.mubr.f32.gmra.mrb[0].mxu0 %v281
    %v1706 = vpop.f32.mrb[0].mxu0
    %v1707 = vadd.f32 %v1562, %v1706
    %v1708 = vpop.f32.mrb[0].mxu0
    %1709 = vmatprep.mubr.f32.mxu0 %v298
    %1710 = vmatmul.mubr.f32.gmra.mrb[0].mxu0 %v297
    %v1711 = vpop.f32.mrb[0].mxu0
    %v1712 = vadd.f32 %v1567, %v1711
    %v1713 = vpop.f32.mrb[0].mxu0
    %1714 = vdwg.mxu0
    %v1715 = vadd.f32 %v1637, %v1642
    %v1716 = vadd.f32 %v1715, %v1647
    %v1717 = vadd.f32 %v1716, %v1652
    %v1718 = vadd.f32 %v1717, %v1657
    %v1719 = vadd.f32 %v1718, %v1662
    %v1720 = vadd.f32 %v1719, %v1667
    %v1721 = vadd.f32 %v1720, %v1672
    %v1722 = vrot.slane %v1721, 4
    %v1723 = vadd.f32 %v1721, %v1722
    %v1724 = vrot.slane %v1723, 2
    %v1725 = vadd.f32 %v1723, %v1724
    %v1726 = vrot.slane %v1725, 1
    %v1727 = vadd.f32 %v1725, %v1726
    %v1728 = vadd.f32 %v1677, %v1682
    %v1729 = vadd.f32 %v1728, %v1687
    %v1730 = vadd.f32 %v1729, %v1692
    %v1731 = vadd.f32 %v1730, %v1697
    %v1732 = vadd.f32 %v1731, %v1702
    %v1733 = vadd.f32 %v1732, %v1707
    %v1734 = vadd.f32 %v1733, %v1712
    %v1735 = vrot.slane %v1734, 4
    %v1736 = vadd.f32 %v1734, %v1735
    %v1737 = vrot.slane %v1736, 2
    %v1738 = vadd.f32 %v1736, %v1737
    %v1739 = vrot.slane %v1738, 1
    %v1740 = vadd.f32 %v1738, %v1739
    %v1741 = vld [vmem:[%s2] sm:$0x1]
    %v1743 = vlaneseq
    %v1744 = vshrl.u32 %v1743, 7
    %v1745 = vsub.s32 0, %v1744
    %v1746 = vrot.slane %v1741, %v1745
    %v1748 = vadd.f32 %v1727, %v1746
    %v1749 = vadd.f32 %v1740, %v1746
    %v1752 = vrot.slane %v1749, 7
    %vm1753 = vcmask 1041409
    %v1754 = vsel %vm1753, %v1752, %v1748
    %1756 = vst [vmem:[#allocation7] sm:$0x3] %v1754
    // Predicated region
    $region22: #{tpu_custom_call.1} parent=1 // pred_check
      _
    $region23: #{tpu_custom_call.1} parent=1 // pred_check_branch
      %1758 = sbr.rel (0) target = $region25
    $region24: #{tpu_custom_call.1} parent=1 // pred_region
      %s1760 = ssub.s32 32, 32
      %1761 = vsyncadd [#allocation4], %s1760
      %s1763 = sshll.u32 [#allocation7], 4
      %s1764 = int_to_ptr.vmem [resolvable:$true] %s1763
      %1766 = dma.vmem_to_hbm [thread:$0]  %s1764, 32, %s3, [#allocation4]
    $region25: #{tpu_custom_call.1} parent=1 // pred_fallthru
      _
    // Predicated region
    $region26: #{tpu_custom_call.1} parent=1 // pred_check
      _
    $region27: #{tpu_custom_call.1} parent=1 // pred_check_branch
      %1768 = sbr.rel (0) target = $region29
    $region28: #{tpu_custom_call.1} parent=1 // pred_region
      %1769 = dma.done [#allocation4], 32
    $region29: #{tpu_custom_call.1} parent=1 // pred_fallthru
      _
    %1770 = vsyncpa [#allocation3], 1
    %1771 = vsyncpa [#allocation6], 1
    %1772 = vsyncpa [#allocation4], 1

</llo_original>
